<compile_context>
chip_gen: v6e
topology: v6e:2x2x1
jax: 0.10.0
libtpu: 0.0.40
codegen_flags: <defaults>
</compile_context>

<pallas_src>
import functools

import numpy as np
import jax
import jax.numpy as jnp
from jax import lax
from jax.experimental import pallas as pl
from jax.experimental.pallas import tpu as pltpu


# dot_general dimension numbers: contract dim 1 of both operands  ==  A @ B.T
_DN_LAST = (((1,), (1,)), ((), ()))


def _mmd_kernel(t_ref, s_ref, mt_ref, ms_ref, sel_ref, out_ref,
                g_tt, g_ss, g_ts, *,
                w_m, sigma_base, kernel, eps, n_real):
    k = pl.program_id(0)
    nk = pl.num_programs(0)

    @pl.when(k == 0)
    def _init():
        g_tt[...] = jnp.zeros_like(g_tt)
        g_ss[...] = jnp.zeros_like(g_ss)
        g_ts[...] = jnp.zeros_like(g_ts)

    # ---- Gram accumulation over the D tiles (MXU, f32 accumulation) --------
    t_blk = t_ref[...]                      # (Np, tk) native dtype
    s_blk = s_ref[...]
    g_tt[...] += lax.dot_general(t_blk, t_blk, _DN_LAST,
                                 preferred_element_type=jnp.float32)
    g_ss[...] += lax.dot_general(s_blk, s_blk, _DN_LAST,
                                 preferred_element_type=jnp.float32)
    g_ts[...] += lax.dot_general(t_blk, s_blk, _DN_LAST,
                                 preferred_element_type=jnp.float32)

    # ---- Epilogue: kernel matrices + one-hot-matmul masked reduction -------
    @pl.when(k == nk - 1)
    def _epilogue():
        gtt = g_tt[...]
        gss = g_ss[...]
        gts = g_ts[...]
        n_p = gtt.shape[0]

        # Squared norms come straight off the Gram diagonals.
        row_i = lax.broadcasted_iota(jnp.int32, (n_p, n_p), 0)
        col_i = lax.broadcasted_iota(jnp.int32, (n_p, n_p), 1)
        eye_n = (row_i == col_i).astype(jnp.float32)
        tt_d = gtt * eye_n
        ss_d = gss * eye_n
        tsq_c = jnp.sum(tt_d, axis=1, keepdims=True)    # (Np, 1) = ||t_i||^2
        tsq_r = jnp.sum(tt_d, axis=0, keepdims=True)    # (1, Np)
        ssq_c = jnp.sum(ss_d, axis=1, keepdims=True)
        ssq_r = jnp.sum(ss_d, axis=0, keepdims=True)

        if kernel == 'poly':
            # F.normalize: x / max(||x||, 1e-12)  ->  rsqrt(max(||x||^2, 1e-24))
            it_c = lax.rsqrt(jnp.maximum(tsq_c, 1e-24))
            it_r = lax.rsqrt(jnp.maximum(tsq_r, 1e-24))
            is_c = lax.rsqrt(jnp.maximum(ssq_c, 1e-24))
            is_r = lax.rsqrt(jnp.maximum(ssq_r, 1e-24))
            k_tt = (gtt * it_c * it_r) ** 2
            k_ss = (gss * is_c * is_r) ** 2
            k_ts = (gts * it_c * is_r) ** 2
        else:  # 'rbf'
            d_ts = jnp.maximum(tsq_c + ssq_r - 2.0 * gts, eps)
            # sigma_avg = mean over the *real* N x N teacher-vs-student block,
            # with the validity mask rebuilt from the iotas we already have.
            valid = jnp.logical_and(row_i < n_real,
                                    col_i < n_real).astype(jnp.float32)
            sigma_avg = jnp.sum(d_ts * valid) / jnp.float32(n_real * n_real)
            inv_den = 1.0 / (2.0 * sigma_base * sigma_avg)   # one scalar divide
            d_tt = jnp.maximum(tsq_c + tsq_r - 2.0 * gtt, eps)
            d_ss = jnp.maximum(ssq_c + ssq_r - 2.0 * gss, eps)
            k_ts = jnp.exp(-d_ts * inv_den)
            k_tt = jnp.exp(-d_tt * inv_den)
            k_ss = jnp.exp(-d_ss * inv_den)

        m_t = mt_ref[...]          # (Ct,  Np) one-hot class masks   (f32)
        m_s = ms_ref[...]          # (CGp, Np) one-hot class*G+group (f32)
        sel = sel_ref[...]         # (Ct, CGp) valid (c, c*G+g) pair selector
        n_cg = m_s.shape[0]

        # Every per-(class, group) subset sum at once via one-hot matmuls.
        p_t = jnp.dot(m_t, k_tt, preferred_element_type=jnp.float32)   # (Ct, Np)
        s_tt = jnp.sum(p_t * m_t, axis=1, keepdims=True)               # (Ct, 1)
        p_s = jnp.dot(m_s, k_ss, preferred_element_type=jnp.float32)   # (CGp, Np)
        s_ss = jnp.sum(p_s * m_s, axis=1, keepdims=True)               # (CGp, 1)
        p_ts = jnp.dot(m_t, k_ts, preferred_element_type=jnp.float32)  # (Ct, Np)
        b_ts = lax.dot_general(p_ts, m_s, _DN_LAST,
                               preferred_element_type=jnp.float32)     # (Ct, CGp)

        n_t = jnp.sum(m_t, axis=1, keepdims=True)                      # (Ct, 1)
        n_s = jnp.sum(m_s, axis=1, keepdims=True)                      # (CGp, 1)
        inv_nt = 1.0 / jnp.maximum(n_t, 1.0)
        inv_ns = 1.0 / jnp.maximum(n_s, 1.0)

        # Small diagonal helpers keep all per-group vectors in column layout
        # (no transposes, no degenerate M=1 matmuls).
        r_cg = lax.broadcasted_iota(jnp.int32, (n_cg, n_cg), 0)
        c_cg = lax.broadcasted_iota(jnp.int32, (n_cg, n_cg), 1)
        eye_cg = (r_cg == c_cg).astype(jnp.float32)

        # Pair weights: sel * [n_t > 0] * [n_s > 0]  (torch skips empty subsets)
        w = sel * (n_t > 0.0).astype(jnp.float32)
        w = jnp.dot(w, (n_s > 0.0).astype(jnp.float32) * eye_cg,
                    preferred_element_type=jnp.float32)                # (Ct, CGp)

        mean_tt = s_tt * inv_nt * inv_nt                               # (Ct, 1)
        mean_ss = s_ss * inv_ns * inv_ns                               # (CGp, 1)
        c_tt = jnp.sum(w * mean_tt)
        c_ss = jnp.sum(jnp.dot(w, mean_ss * eye_cg,
                               preferred_element_type=jnp.float32))
        c_ts = jnp.sum(jnp.dot(w * b_ts * inv_nt, inv_ns * eye_cg,
                               preferred_element_type=jnp.float32))

        mmd = c_tt + c_ss - 2.0 * c_ts
        out_ref[0, 0] = 0.5 * w_m * mmd


def _round_up(x, m):
    return (x + m - 1) // m * m


def mmd_loss(f_s, f_t, groups, labels, *, w_m, sigma, num_groups, num_classes,
             kernel='rbf'):
    n = f_s.shape[0]
    student = f_s.reshape(n, -1)
    teacher = f_t.reshape(n, -1)
    d = student.shape[1]
    feat_dtype = student.dtype
    itemsize = feat_dtype.itemsize

    # Lane / sublane friendly padding.
    n_pad = _round_up(max(n, 8), 8)
    d_pad = _round_up(max(d, 128), 128)
    ct = _round_up(max(num_classes, 8), 8)
    cg = _round_up(max(num_classes * num_groups, 8), 8)

    def pad_feat(x):
        return jnp.zeros((n_pad, d_pad), feat_dtype).at[:n, :d].set(x)

    t_pad = pad_feat(teacher)     # keep native dtype (bf16 stays bf16)
    s_pad = pad_feat(student)

    # One-hot masks (padded rows carry label/group -1 => match no class/group).
    lab = jnp.full((n_pad,), -1, jnp.int32).at[:n].set(labels.astype(jnp.int32))
    grp = jnp.full((n_pad,), -1, jnp.int32).at[:n].set(groups.astype(jnp.int32))
    cls_ids = jnp.arange(ct, dtype=jnp.int32)
    m_t = ((lab[None, :] == cls_ids[:, None]) &
           (cls_ids[:, None] < num_classes)).astype(jnp.float32)       # (ct, n_pad)
    comb = jnp.where(lab >= 0, lab * num_groups + grp, -1)
    cg_ids = jnp.arange(cg, dtype=jnp.int32)
    m_s = ((comb[None, :] == cg_ids[:, None]) &
           (cg_ids[:, None] < num_classes * num_groups)).astype(jnp.float32)

    sel_np = np.zeros((ct, cg), np.float32)
    for c in range(num_classes):
        for g in range(num_groups):
            sel_np[c, c * num_groups + g] = 1.0
    sel = jnp.asarray(sel_np)

    # ---- D-tile size: VMEM-budget driven -----------------------------------
    # Accumulators + epilogue temporaries scale with Np^2; whatever VMEM is
    # left goes to the double-buffered (teacher + student) feature tiles.
    # Tiles are capped at 2048 lanes so long feature vectors still pipeline.
    acc_bytes = 11 * n_pad * n_pad * 4            # Gram scratch + epilogue temps
    feat_budget = max(4 << 20, (40 << 20) - acc_bytes)
    per_col_bytes = 2 * 2 * n_pad * itemsize      # t+s, double-buffered, per col
    cap_cols = max(128, feat_budget // per_col_bytes)
    units = d_pad // 128
    cap_units = max(1, min(cap_cols // 128, 16, units))
    tile_units = max(u for u in range(1, cap_units + 1) if units % u == 0)
    tk = tile_units * 128
    grid = (units // tile_units,)

    kern = functools.partial(
        _mmd_kernel, w_m=float(w_m), sigma_base=float(sigma),
        kernel=kernel, eps=1e-12, n_real=int(n))

    flops = (3 * 2 * n_pad * n_pad * d_pad               # Gram accumulation
             + 2 * (2 * ct + cg) * n_pad * n_pad         # one-hot reductions
             + 2 * ct * cg * n_pad)
    transcendentals = 3 * n_pad * n_pad if kernel != 'poly' else 0
    bytes_accessed = (2 * n_pad * d_pad * itemsize
                      + (ct + cg) * n_pad * 4 + ct * cg * 4 + 4)
    cost = pl.CostEstimate(flops=int(flops),
                           transcendentals=int(transcendentals),
                           bytes_accessed=int(bytes_accessed))

    vmem_need = (acc_bytes                                # Grams + epilogue temps
                 + 2 * 2 * n_pad * tk * itemsize          # double-buffered features
                 + 2 * (ct + cg) * n_pad * 4              # mask buffers
                 + 2 * ct * cg * 4
                 + (2 << 20))                             # headroom
    vmem_limit = int(min(max(vmem_need, 32 << 20), 64 << 20))

    out = pl.pallas_call(
        kern,
        out_shape=jax.ShapeDtypeStruct((1, 1), jnp.float32),
        grid_spec=pltpu.PrefetchScalarGridSpec(
            num_scalar_prefetch=0,
            grid=grid,
            in_specs=[
                pl.BlockSpec((n_pad, tk), lambda k: (0, k)),    # teacher tile
                pl.BlockSpec((n_pad, tk), lambda k: (0, k)),    # student tile
                pl.BlockSpec((ct, n_pad), lambda k: (0, 0)),    # one-hot class
                pl.BlockSpec((cg, n_pad), lambda k: (0, 0)),    # one-hot (c,g)
                pl.BlockSpec((ct, cg), lambda k: (0, 0)),       # pair selector
            ],
            out_specs=pl.BlockSpec((1, 1), lambda k: (0, 0),
                                   memory_space=pltpu.MemorySpace.SMEM),
            scratch_shapes=[
                pltpu.VMEM((n_pad, n_pad), jnp.float32),        # t . t^T
                pltpu.VMEM((n_pad, n_pad), jnp.float32),        # s . s^T
                pltpu.VMEM((n_pad, n_pad), jnp.float32),        # t . s^T
            ]),
        compiler_params=pltpu.CompilerParams(
            dimension_semantics=("arbitrary",),
            vmem_limit_bytes=vmem_limit),
        cost_estimate=cost,
    )(t_pad, s_pad, m_t, m_s, sel)
    return out[0, 0]


def _mmd_loss_ref_numpy(f_s, f_t, groups, labels, w_m, sigma,
                        num_groups, num_classes, kernel='rbf'):
    """Host-side reference mirroring the torch code (explicit subset gathers)."""
    s = np.asarray(f_s, np.float32).reshape(f_s.shape[0], -1)
    t = np.asarray(f_t, np.float32).reshape(f_t.shape[0], -1)
    labels = np.asarray(labels)
    groups = np.asarray(groups)
    if kernel == 'poly':
        s = s / np.maximum(np.linalg.norm(s, axis=1, keepdims=True), 1e-12)
        t = t / np.maximum(np.linalg.norm(t, axis=1, keepdims=True), 1e-12)

    def pdist(e1, e2, sigma_avg=None):
        if len(e1) == 0 or len(e2) == 0:
            return np.zeros(1, np.float32), sigma_avg
        if kernel == 'rbf':
            dd = ((e1 ** 2).sum(1)[:, None] + (e2 ** 2).sum(1)[None, :]
                  - 2.0 * e1 @ e2.T)
            dd = np.clip(dd, 1e-12, None)
            if sigma_avg is None:
                sigma_avg = dd.mean()
            return np.exp(-dd / (2.0 * sigma * sigma_avg)), sigma_avg
        return (e1 @ e2.T) ** 2, sigma_avg

    _, sigma_avg = pdist(t, s)
    mmd = 0.0
    for c in range(num_classes):
        tc = t[labels == c]
        if len(tc) == 0:
            continue
        for g in range(num_groups):
            scg = s[(labels == c) & (groups == g)]
            if len(scg) == 0:
                continue
            K_TS, _ = pdist(tc, scg, sigma_avg)
            K_SS, _ = pdist(scg, scg, sigma_avg)
            K_TT, _ = pdist(tc, tc, sigma_avg)
            mmd += K_TT.mean() + K_SS.mean() - 2.0 * K_TS.mean()
    return 0.5 * w_m * mmd


if __name__ == "__main__":
    key = jax.random.PRNGKey(0)
    configs = [
        # (N, C, H, W, n_classes, n_groups, kernel, dtype, rtol, atol)
        (16, 4, 16, 16, 3, 2, 'rbf',  jnp.float32,  1e-3, 1e-5),   # D=1024
        (10, 4, 4,  4,  2, 2, 'poly', jnp.float32,  1e-3, 1e-5),   # N,D padding path
        (9,  3, 5,  7,  2, 3, 'rbf',  jnp.float32,  1e-3, 1e-5),   # masked sigma_avg
        (16, 2, 8,  8,  3, 2, 'rbf',  jnp.bfloat16, 5e-3, 1e-4),   # bf16 streaming
    ]
    for cfg_idx, (N, C, H, W, ncls, ngrp, ktype, dt, rtol, atol) in enumerate(configs):
        key, k1, k2, k3, k4 = jax.random.split(key, 5)
        f_s = jax.random.normal(k1, (N, C, H, W), jnp.float32).astype(dt)
        f_t = jax.random.normal(k2, (N, C, H, W), jnp.float32).astype(dt)
        labels = jax.random.randint(k3, (N,), 0, ncls)
        groups = jax.random.randint(k4, (N,), 0, ngrp)

        loss = mmd_loss(f_s, f_t, groups, labels, w_m=1.0, sigma=1.0,
                        num_groups=ngrp, num_classes=ncls, kernel=ktype)
        loss = float(jax.block_until_ready(loss))

        ref = _mmd_loss_ref_numpy(
            np.asarray(f_s.astype(jnp.float32)),
            np.asarray(f_t.astype(jnp.float32)),
            np.asarray(groups), np.asarray(labels),
            w_m=1.0, sigma=1.0, num_groups=ngrp, num_classes=ncls, kernel=ktype)

        assert np.allclose(loss, float(ref), rtol=rtol, atol=atol), \
            (cfg_idx, ktype, loss, float(ref))
    print("KERNEL_OK")
</pallas_src>

<mosaic_0001>
module attributes {stable_mosaic.version = 11 : i64} {
  func.func @_mmd_kernel(%arg0: i32, %arg1: memref<16x1024xf32, #tpu.memory_space<vmem>>, %arg2: memref<16x1024xf32, #tpu.memory_space<vmem>>, %arg3: memref<8x16xf32, #tpu.memory_space<vmem>>, %arg4: memref<8x16xf32, #tpu.memory_space<vmem>>, %arg5: memref<8x8xf32, #tpu.memory_space<vmem>>, %arg6: memref<1x1xf32, #tpu.memory_space<smem>>, %arg7: memref<16x16xf32, #tpu.memory_space<vmem>>, %arg8: memref<16x16xf32, #tpu.memory_space<vmem>>, %arg9: memref<16x16xf32, #tpu.memory_space<vmem>>) attributes {dimension_semantics = [#tpu.dimension_semantics<arbitrary>], iteration_bounds = array<i64: 1>, scalar_prefetch = 0 : i64, scratch_operands = 3 : i64, tpu.core_type = #tpu.core_type<tc>, window_params = [{transform_indices = @transform_0, window_bounds = array<i64: 16, 1024>}, {transform_indices = @transform_1, window_bounds = array<i64: 16, 1024>}, {pipeline_mode = #tpu.pipeline_mode<synchronous>, transform_indices = @transform_2, window_bounds = array<i64: 8, 16>}, {pipeline_mode = #tpu.pipeline_mode<synchronous>, transform_indices = @transform_3, window_bounds = array<i64: 8, 16>}, {pipeline_mode = #tpu.pipeline_mode<synchronous>, transform_indices = @transform_4, window_bounds = array<i64: 8, 8>}, {transform_indices = @transform_5, window_bounds = array<i64: 1, 1>}]} {
    %c0_i32 = arith.constant 0 : i32
    %0 = arith.cmpi eq, %arg0, %c0_i32 : i32
    %1 = arith.extui %0 : i1 to i32
    %c0_i32_0 = arith.constant 0 : i32
    %2 = arith.cmpi ne, %1, %c0_i32_0 : i32
    scf.if %2 {
      %cst_20 = arith.constant 0.000000e+00 : f32
      %20 = vector.broadcast %cst_20 : f32 to vector<16x16xf32>
      %c0_21 = arith.constant 0 : index
      %c0_22 = arith.constant 0 : index
      %21 = vector.load %arg7[%c0_21, %c0_22] : memref<16x16xf32, #tpu.memory_space<vmem>>, vector<16x16xf32>
      tpu.vector_store %arg7[%c0_21, %c0_22], %20 {strides = array<i32>} : memref<16x16xf32, #tpu.memory_space<vmem>>, vector<16x16xf32>,
      %cst_23 = arith.constant 0.000000e+00 : f32
      %22 = vector.broadcast %cst_23 : f32 to vector<16x16xf32>
      %c0_24 = arith.constant 0 : index
      %c0_25 = arith.constant 0 : index
      %23 = vector.load %arg8[%c0_24, %c0_25] : memref<16x16xf32, #tpu.memory_space<vmem>>, vector<16x16xf32>
      tpu.vector_store %arg8[%c0_24, %c0_25], %22 {strides = array<i32>} : memref<16x16xf32, #tpu.memory_space<vmem>>, vector<16x16xf32>,
      %cst_26 = arith.constant 0.000000e+00 : f32
      %24 = vector.broadcast %cst_26 : f32 to vector<16x16xf32>
      %c0_27 = arith.constant 0 : index
      %c0_28 = arith.constant 0 : index
      %25 = vector.load %arg9[%c0_27, %c0_28] : memref<16x16xf32, #tpu.memory_space<vmem>>, vector<16x16xf32>
      tpu.vector_store %arg9[%c0_27, %c0_28], %24 {strides = array<i32>} : memref<16x16xf32, #tpu.memory_space<vmem>>, vector<16x16xf32>,
    } else {
    }
    %c0 = arith.constant 0 : index
    %c0_1 = arith.constant 0 : index
    %3 = vector.load %arg1[%c0, %c0_1] : memref<16x1024xf32, #tpu.memory_space<vmem>>, vector<16x1024xf32>
    %c0_2 = arith.constant 0 : index
    %c0_3 = arith.constant 0 : index
    %4 = vector.load %arg2[%c0_2, %c0_3] : memref<16x1024xf32, #tpu.memory_space<vmem>>, vector<16x1024xf32>
    %c0_4 = arith.constant 0 : index
    %c0_5 = arith.constant 0 : index
    %5 = vector.load %arg7[%c0_4, %c0_5] : memref<16x16xf32, #tpu.memory_space<vmem>>, vector<16x16xf32>
    %cst = arith.constant dense<0.000000e+00> : vector<16x16xf32>
    %6 = tpu.matmul %3, %3, %cst {dimension_numbers = #tpu.dot_dimension_numbers<[1], [1], [0], [0], [0, 0, 1, 0], [], []>} : vector<16x1024xf32>, vector<16x1024xf32>, vector<16x16xf32> -> vector<16x16xf32>
    %7 = arith.addf %5, %6 : vector<16x16xf32>
    %c0_6 = arith.constant 0 : index
    %c0_7 = arith.constant 0 : index
    %8 = vector.load %arg7[%c0_6, %c0_7] : memref<16x16xf32, #tpu.memory_space<vmem>>, vector<16x16xf32>
    tpu.vector_store %arg7[%c0_6, %c0_7], %7 {strides = array<i32>} : memref<16x16xf32, #tpu.memory_space<vmem>>, vector<16x16xf32>,
    %c0_8 = arith.constant 0 : index
    %c0_9 = arith.constant 0 : index
    %9 = vector.load %arg8[%c0_8, %c0_9] : memref<16x16xf32, #tpu.memory_space<vmem>>, vector<16x16xf32>
    %cst_10 = arith.constant dense<0.000000e+00> : vector<16x16xf32>
    %10 = tpu.matmul %4, %4, %cst_10 {dimension_numbers = #tpu.dot_dimension_numbers<[1], [1], [0], [0], [0, 0, 1, 0], [], []>} : vector<16x1024xf32>, vector<16x1024xf32>, vector<16x16xf32> -> vector<16x16xf32>
    %11 = arith.addf %9, %10 : vector<16x16xf32>
    %c0_11 = arith.constant 0 : index
    %c0_12 = arith.constant 0 : index
    %12 = vector.load %arg8[%c0_11, %c0_12] : memref<16x16xf32, #tpu.memory_space<vmem>>, vector<16x16xf32>
    tpu.vector_store %arg8[%c0_11, %c0_12], %11 {strides = array<i32>} : memref<16x16xf32, #tpu.memory_space<vmem>>, vector<16x16xf32>,
    %c0_13 = arith.constant 0 : index
    %c0_14 = arith.constant 0 : index
    %13 = vector.load %arg9[%c0_13, %c0_14] : memref<16x16xf32, #tpu.memory_space<vmem>>, vector<16x16xf32>
    %cst_15 = arith.constant dense<0.000000e+00> : vector<16x16xf32>
    %14 = tpu.matmul %3, %4, %cst_15 {dimension_numbers = #tpu.dot_dimension_numbers<[1], [1], [0], [0], [0, 0, 1, 0], [], []>} : vector<16x1024xf32>, vector<16x1024xf32>, vector<16x16xf32> -> vector<16x16xf32>
    %15 = arith.addf %13, %14 : vector<16x16xf32>
    %c0_16 = arith.constant 0 : index
    %c0_17 = arith.constant 0 : index
    %16 = vector.load %arg9[%c0_16, %c0_17] : memref<16x16xf32, #tpu.memory_space<vmem>>, vector<16x16xf32>
    tpu.vector_store %arg9[%c0_16, %c0_17], %15 {strides = array<i32>} : memref<16x16xf32, #tpu.memory_space<vmem>>, vector<16x16xf32>,
    %c0_i32_18 = arith.constant 0 : i32
    %17 = arith.cmpi eq, %arg0, %c0_i32_18 : i32
    %18 = arith.extui %17 : i1 to i32
    %c0_i32_19 = arith.constant 0 : i32
    %19 = arith.cmpi ne, %18, %c0_i32_19 : i32
    scf.if %19 {
      %c0_20 = arith.constant 0 : index
      %c0_21 = arith.constant 0 : index
      %20 = vector.load %arg7[%c0_20, %c0_21] : memref<16x16xf32, #tpu.memory_space<vmem>>, vector<16x16xf32>
      %c0_22 = arith.constant 0 : index
      %c0_23 = arith.constant 0 : index
      %21 = vector.load %arg8[%c0_22, %c0_23] : memref<16x16xf32, #tpu.memory_space<vmem>>, vector<16x16xf32>
      %c0_24 = arith.constant 0 : index
      %c0_25 = arith.constant 0 : index
      %22 = vector.load %arg9[%c0_24, %c0_25] : memref<16x16xf32, #tpu.memory_space<vmem>>, vector<16x16xf32>
      %23 = tpu.iota {dimensions = array<i32: 0>} : vector<16x16xi32>
      %24 = tpu.iota {dimensions = array<i32: 1>} : vector<16x16xi32>
      %25 = arith.cmpi eq, %23, %24 : vector<16x16xi32>
      %26 = arith.extui %25 : vector<16x16xi1> to vector<16x16xi32>
      %27 = arith.sitofp %26 : vector<16x16xi32> to vector<16x16xf32>
      %28 = arith.mulf %20, %27 : vector<16x16xf32>
      %29 = arith.mulf %21, %27 : vector<16x16xf32>
      %cst_26 = arith.constant dense<0.000000e+00> : vector<16xf32>
      %30 = vector.multi_reduction <add>, %28, %cst_26 [1] : vector<16x16xf32> to vector<16xf32>
      %31 = vector.shape_cast %30 : vector<16xf32> to vector<16x1xf32>
      %cst_27 = arith.constant dense<0.000000e+00> : vector<16xf32>
      %32 = vector.multi_reduction <add>, %28, %cst_27 [0] : vector<16x16xf32> to vector<16xf32>
      %33 = vector.shape_cast %32 : vector<16xf32> to vector<1x16xf32>
      %cst_28 = arith.constant dense<0.000000e+00> : vector<16xf32>
      %34 = vector.multi_reduction <add>, %29, %cst_28 [1] : vector<16x16xf32> to vector<16xf32>
      %35 = vector.shape_cast %34 : vector<16xf32> to vector<16x1xf32>
      %cst_29 = arith.constant dense<0.000000e+00> : vector<16xf32>
      %36 = vector.multi_reduction <add>, %29, %cst_29 [0] : vector<16x16xf32> to vector<16xf32>
      %37 = vector.shape_cast %36 : vector<16xf32> to vector<1x16xf32>
      %38 = vector.broadcast %31 : vector<16x1xf32> to vector<16x16xf32>
      %39 = vector.broadcast %37 : vector<1x16xf32> to vector<16x16xf32>
      %40 = arith.addf %38, %39 : vector<16x16xf32>
      %cst_30 = arith.constant 2.000000e+00 : f32
      %41 = vector.broadcast %cst_30 : f32 to vector<16x16xf32>
      %42 = arith.mulf %41, %22 : vector<16x16xf32>
      %43 = arith.subf %40, %42 : vector<16x16xf32>
      %cst_31 = arith.constant 9.99999996E-13 : f32
      %44 = vector.broadcast %cst_31 : f32 to vector<16x16xf32>
      %45 = arith.maximumf %43, %44 : vector<16x16xf32>
      %c16_i32 = arith.constant 16 : i32
      %46 = vector.broadcast %c16_i32 : i32 to vector<16x16xi32>
      %47 = arith.cmpi slt, %23, %46 : vector<16x16xi32>
      %c16_i32_32 = arith.constant 16 : i32
      %48 = vector.broadcast %c16_i32_32 : i32 to vector<16x16xi32>
      %49 = arith.cmpi slt, %24, %48 : vector<16x16xi32>
      %50 = arith.andi %47, %49 : vector<16x16xi1>
      %51 = arith.extui %50 : vector<16x16xi1> to vector<16x16xi32>
      %52 = arith.sitofp %51 : vector<16x16xi32> to vector<16x16xf32>
      %53 = arith.mulf %45, %52 : vector<16x16xf32>
      %54 = vector.shape_cast %53 : vector<16x16xf32> to vector<1x16x16xf32>
      %cst_33 = arith.constant dense<0.000000e+00> : vector<1xf32>
      %55 = vector.multi_reduction <add>, %54, %cst_33 [1, 2] : vector<1x16x16xf32> to vector<1xf32>
      %56 = vector.shape_cast %55 : vector<1xf32> to vector<1x1x1xf32>
      %57 = vector.extract %56[0, 0, 0] : f32 from vector<1x1x1xf32>
      %cst_34 = arith.constant 2.560000e+02 : f32
      %58 = arith.divf %57, %cst_34 : f32
      %cst_35 = arith.constant 2.000000e+00 : f32
      %59 = arith.mulf %cst_35, %58 : f32
      %cst_36 = arith.constant 1.000000e+00 : f32
      %60 = arith.divf %cst_36, %59 : f32
      %61 = vector.broadcast %31 : vector<16x1xf32> to vector<16x16xf32>
      %62 = vector.broadcast %33 : vector<1x16xf32> to vector<16x16xf32>
      %63 = arith.addf %61, %62 : vector<16x16xf32>
      %cst_37 = arith.constant 2.000000e+00 : f32
      %64 = vector.broadcast %cst_37 : f32 to vector<16x16xf32>
      %65 = arith.mulf %64, %20 : vector<16x16xf32>
      %66 = arith.subf %63, %65 : vector<16x16xf32>
      %cst_38 = arith.constant 9.99999996E-13 : f32
      %67 = vector.broadcast %cst_38 : f32 to vector<16x16xf32>
      %68 = arith.maximumf %66, %67 : vector<16x16xf32>
      %69 = vector.broadcast %35 : vector<16x1xf32> to vector<16x16xf32>
      %70 = vector.broadcast %37 : vector<1x16xf32> to vector<16x16xf32>
      %71 = arith.addf %69, %70 : vector<16x16xf32>
      %cst_39 = arith.constant 2.000000e+00 : f32
      %72 = vector.broadcast %cst_39 : f32 to vector<16x16xf32>
      %73 = arith.mulf %72, %21 : vector<16x16xf32>
      %74 = arith.subf %71, %73 : vector<16x16xf32>
      %cst_40 = arith.constant 9.99999996E-13 : f32
      %75 = vector.broadcast %cst_40 : f32 to vector<16x16xf32>
      %76 = arith.maximumf %74, %75 : vector<16x16xf32>
      %cst_41 = arith.constant 0.000000e+00 : f32
      %77 = vector.broadcast %cst_41 : f32 to vector<16x16xf32>
      %78 = arith.subf %77, %45 : vector<16x16xf32>
      %79 = vector.broadcast %60 : f32 to vector<16x16xf32>
      %80 = arith.mulf %78, %79 : vector<16x16xf32>
      %81 = math.exp %80 : vector<16x16xf32>
      %cst_42 = arith.constant 0.000000e+00 : f32
      %82 = vector.broadcast %cst_42 : f32 to vector<16x16xf32>
      %83 = arith.subf %82, %68 : vector<16x16xf32>
      %84 = vector.broadcast %60 : f32 to vector<16x16xf32>
      %85 = arith.mulf %83, %84 : vector<16x16xf32>
      %86 = math.exp %85 : vector<16x16xf32>
      %cst_43 = arith.constant 0.000000e+00 : f32
      %87 = vector.broadcast %cst_43 : f32 to vector<16x16xf32>
      %88 = arith.subf %87, %76 : vector<16x16xf32>
      %89 = vector.broadcast %60 : f32 to vector<16x16xf32>
      %90 = arith.mulf %88, %89 : vector<16x16xf32>
      %91 = math.exp %90 : vector<16x16xf32>
      %c0_44 = arith.constant 0 : index
      %c0_45 = arith.constant 0 : index
      %92 = vector.load %arg3[%c0_44, %c0_45] : memref<8x16xf32, #tpu.memory_space<vmem>>, vector<8x16xf32>
      %c0_46 = arith.constant 0 : index
      %c0_47 = arith.constant 0 : index
      %93 = vector.load %arg4[%c0_46, %c0_47] : memref<8x16xf32, #tpu.memory_space<vmem>>, vector<8x16xf32>
      %c0_48 = arith.constant 0 : index
      %c0_49 = arith.constant 0 : index
      %94 = vector.load %arg5[%c0_48, %c0_49] : memref<8x8xf32, #tpu.memory_space<vmem>>, vector<8x8xf32>
      %cst_50 = arith.constant dense<0.000000e+00> : vector<8x16xf32>
      %95 = tpu.matmul %92, %86, %cst_50 {dimension_numbers = #tpu.dot_dimension_numbers<[1], [0], [0], [1], [0, 0, 1, 1], [], []>} : vector<8x16xf32>, vector<16x16xf32>, vector<8x16xf32> -> vector<8x16xf32>
      %96 = arith.mulf %95, %92 : vector<8x16xf32>
      %cst_51 = arith.constant dense<0.000000e+00> : vector<8xf32>
      %97 = vector.multi_reduction <add>, %96, %cst_51 [1] : vector<8x16xf32> to vector<8xf32>
      %98 = vector.shape_cast %97 : vector<8xf32> to vector<8x1xf32>
      %cst_52 = arith.constant dense<0.000000e+00> : vector<8x16xf32>
      %99 = tpu.matmul %93, %91, %cst_52 {dimension_numbers = #tpu.dot_dimension_numbers<[1], [0], [0], [1], [0, 0, 1, 1], [], []>} : vector<8x16xf32>, vector<16x16xf32>, vector<8x16xf32> -> vector<8x16xf32>
      %100 = arith.mulf %99, %93 : vector<8x16xf32>
      %cst_53 = arith.constant dense<0.000000e+00> : vector<8xf32>
      %101 = vector.multi_reduction <add>, %100, %cst_53 [1] : vector<8x16xf32> to vector<8xf32>
      %102 = vector.shape_cast %101 : vector<8xf32> to vector<8x1xf32>
      %cst_54 = arith.constant dense<0.000000e+00> : vector<8x16xf32>
      %103 = tpu.matmul %92, %81, %cst_54 {dimension_numbers = #tpu.dot_dimension_numbers<[1], [0], [0], [1], [0, 0, 1, 1], [], []>} : vector<8x16xf32>, vector<16x16xf32>, vector<8x16xf32> -> vector<8x16xf32>
      %cst_55 = arith.constant dense<0.000000e+00> : vector<8x8xf32>
      %104 = tpu.matmul %103, %93, %cst_55 {dimension_numbers = #tpu.dot_dimension_numbers<[1], [1], [0], [0], [0, 0, 1, 0], [], []>} : vector<8x16xf32>, vector<8x16xf32>, vector<8x8xf32> -> vector<8x8xf32>
      %cst_56 = arith.constant dense<0.000000e+00> : vector<8xf32>
      %105 = vector.multi_reduction <add>, %92, %cst_56 [1] : vector<8x16xf32> to vector<8xf32>
      %106 = vector.shape_cast %105 : vector<8xf32> to vector<8x1xf32>
      %cst_57 = arith.constant dense<0.000000e+00> : vector<8xf32>
      %107 = vector.multi_reduction <add>, %93, %cst_57 [1] : vector<8x16xf32> to vector<8xf32>
      %108 = vector.shape_cast %107 : vector<8xf32> to vector<8x1xf32>
      %cst_58 = arith.constant 1.000000e+00 : f32
      %109 = vector.broadcast %cst_58 : f32 to vector<8x1xf32>
      %110 = arith.maximumf %106, %109 : vector<8x1xf32>
      %cst_59 = arith.constant 1.000000e+00 : f32
      %111 = vector.broadcast %cst_59 : f32 to vector<8x1xf32>
      %112 = arith.divf %111, %110 : vector<8x1xf32>
      %cst_60 = arith.constant 1.000000e+00 : f32
      %113 = vector.broadcast %cst_60 : f32 to vector<8x1xf32>
      %114 = arith.maximumf %108, %113 : vector<8x1xf32>
      %cst_61 = arith.constant 1.000000e+00 : f32
      %115 = vector.broadcast %cst_61 : f32 to vector<8x1xf32>
      %116 = arith.divf %115, %114 : vector<8x1xf32>
      %117 = tpu.iota {dimensions = array<i32: 0>} : vector<8x8xi32>
      %118 = tpu.iota {dimensions = array<i32: 1>} : vector<8x8xi32>
      %119 = arith.cmpi eq, %117, %118 : vector<8x8xi32>
      %120 = arith.extui %119 : vector<8x8xi1> to vector<8x8xi32>
      %121 = arith.sitofp %120 : vector<8x8xi32> to vector<8x8xf32>
      %cst_62 = arith.constant 0.000000e+00 : f32
      %122 = vector.broadcast %cst_62 : f32 to vector<8x1xf32>
      %123 = arith.cmpf ogt, %106, %122 : vector<8x1xf32>
      %124 = arith.extui %123 : vector<8x1xi1> to vector<8x1xi32>
      %125 = arith.sitofp %124 : vector<8x1xi32> to vector<8x1xf32>
      %126 = vector.broadcast %125 : vector<8x1xf32> to vector<8x8xf32>
      %127 = arith.mulf %94, %126 : vector<8x8xf32>
      %cst_63 = arith.constant 0.000000e+00 : f32
      %128 = vector.broadcast %cst_63 : f32 to vector<8x1xf32>
      %129 = arith.cmpf ogt, %108, %128 : vector<8x1xf32>
      %130 = arith.extui %129 : vector<8x1xi1> to vector<8x1xi32>
      %131 = arith.sitofp %130 : vector<8x1xi32> to vector<8x1xf32>
      %132 = vector.broadcast %131 : vector<8x1xf32> to vector<8x8xf32>
      %133 = arith.mulf %132, %121 : vector<8x8xf32>
      %cst_64 = arith.constant dense<0.000000e+00> : vector<8x8xf32>
      %134 = tpu.matmul %127, %133, %cst_64 {dimension_numbers = #tpu.dot_dimension_numbers<[1], [0], [0], [1], [0, 0, 1, 1], [], []>} : vector<8x8xf32>, vector<8x8xf32>, vector<8x8xf32> -> vector<8x8xf32>
      %135 = arith.mulf %98, %112 : vector<8x1xf32>
      %136 = arith.mulf %135, %112 : vector<8x1xf32>
      %137 = arith.mulf %102, %116 : vector<8x1xf32>
      %138 = arith.mulf %137, %116 : vector<8x1xf32>
      %139 = vector.broadcast %136 : vector<8x1xf32> to vector<8x8xf32>
      %140 = arith.mulf %134, %139 : vector<8x8xf32>
      %141 = vector.shape_cast %140 : vector<8x8xf32> to vector<1x8x8xf32>
      %cst_65 = arith.constant dense<0.000000e+00> : vector<1xf32>
      %142 = vector.multi_reduction <add>, %141, %cst_65 [1, 2] : vector<1x8x8xf32> to vector<1xf32>
      %143 = vector.shape_cast %142 : vector<1xf32> to vector<1x1x1xf32>
      %144 = vector.extract %143[0, 0, 0] : f32 from vector<1x1x1xf32>
      %145 = vector.broadcast %138 : vector<8x1xf32> to vector<8x8xf32>
      %146 = arith.mulf %145, %121 : vector<8x8xf32>
      %cst_66 = arith.constant dense<0.000000e+00> : vector<8x8xf32>
      %147 = tpu.matmul %134, %146, %cst_66 {dimension_numbers = #tpu.dot_dimension_numbers<[1], [0], [0], [1], [0, 0, 1, 1], [], []>} : vector<8x8xf32>, vector<8x8xf32>, vector<8x8xf32> -> vector<8x8xf32>
      %148 = vector.shape_cast %147 : vector<8x8xf32> to vector<1x8x8xf32>
      %cst_67 = arith.constant dense<0.000000e+00> : vector<1xf32>
      %149 = vector.multi_reduction <add>, %148, %cst_67 [1, 2] : vector<1x8x8xf32> to vector<1xf32>
      %150 = vector.shape_cast %149 : vector<1xf32> to vector<1x1x1xf32>
      %151 = vector.extract %150[0, 0, 0] : f32 from vector<1x1x1xf32>
      %152 = arith.mulf %134, %104 : vector<8x8xf32>
      %153 = vector.broadcast %112 : vector<8x1xf32> to vector<8x8xf32>
      %154 = arith.mulf %152, %153 : vector<8x8xf32>
      %155 = vector.broadcast %116 : vector<8x1xf32> to vector<8x8xf32>
      %156 = arith.mulf %155, %121 : vector<8x8xf32>
      %cst_68 = arith.constant dense<0.000000e+00> : vector<8x8xf32>
      %157 = tpu.matmul %154, %156, %cst_68 {dimension_numbers = #tpu.dot_dimension_numbers<[1], [0], [0], [1], [0, 0, 1, 1], [], []>} : vector<8x8xf32>, vector<8x8xf32>, vector<8x8xf32> -> vector<8x8xf32>
      %158 = vector.shape_cast %157 : vector<8x8xf32> to vector<1x8x8xf32>
      %cst_69 = arith.constant dense<0.000000e+00> : vector<1xf32>
      %159 = vector.multi_reduction <add>, %158, %cst_69 [1, 2] : vector<1x8x8xf32> to vector<1xf32>
      %160 = vector.shape_cast %159 : vector<1xf32> to vector<1x1x1xf32>
      %161 = vector.extract %160[0, 0, 0] : f32 from vector<1x1x1xf32>
      %162 = arith.addf %144, %151 : f32
      %cst_70 = arith.constant 2.000000e+00 : f32
      %163 = arith.mulf %cst_70, %161 : f32
      %164 = arith.subf %162, %163 : f32
      %cst_71 = arith.constant 5.000000e-01 : f32
      %165 = arith.mulf %cst_71, %164 : f32
      %c0_72 = arith.constant 0 : index
      %c0_73 = arith.constant 0 : index
      %166 = memref.load %arg6[%c0_72, %c0_73] : memref<1x1xf32, #tpu.memory_space<smem>>
      memref.store %165, %arg6[%c0_72, %c0_73] : memref<1x1xf32, #tpu.memory_space<smem>>
    } else {
    }
    return
  }
  func.func @transform_0(%arg0: i32) -> (i32, i32) {
    %c0_i32 = arith.constant 0 : i32
    %c0_i32_0 = arith.constant 0 : i32
    return %c0_i32, %arg0 : i32, i32
  }
  func.func @transform_1(%arg0: i32) -> (i32, i32) {
    %c0_i32 = arith.constant 0 : i32
    %c0_i32_0 = arith.constant 0 : i32
    return %c0_i32, %arg0 : i32, i32
  }
  func.func @transform_2(%arg0: i32) -> (i32, i32) {
    %c0_i32 = arith.constant 0 : i32
    %c0_i32_0 = arith.constant 0 : i32
    %c0_i32_1 = arith.constant 0 : i32
    return %c0_i32, %c0_i32_0 : i32, i32
  }
  func.func @transform_3(%arg0: i32) -> (i32, i32) {
    %c0_i32 = arith.constant 0 : i32
    %c0_i32_0 = arith.constant 0 : i32
    %c0_i32_1 = arith.constant 0 : i32
    return %c0_i32, %c0_i32_0 : i32, i32
  }
  func.func @transform_4(%arg0: i32) -> (i32, i32) {
    %c0_i32 = arith.constant 0 : i32
    %c0_i32_0 = arith.constant 0 : i32
    %c0_i32_1 = arith.constant 0 : i32
    return %c0_i32, %c0_i32_0 : i32, i32
  }
  func.func @transform_5(%arg0: i32) -> (i32, i32) {
    %c0_i32 = arith.constant 0 : i32
    %c0_i32_0 = arith.constant 0 : i32
    %c0_i32_1 = arith.constant 0 : i32
    return %c0_i32, %c0_i32_0 : i32, i32
  }
}

</mosaic_0001>

<llo_original>
// kernel: tpu_custom_call.1
$region0: #{tpu_custom_call.1}
  #allocation0 [shape = 'u32[]', space=smem, size = 0x4, offset = 0x4, fixed_abs, tag = 'smem constant byte address 0x4 - core index']
  #allocation1 [shape = 'u32[144,128]{1,0:T(1,128)}', space=vmem, size = 0x12000, scoped, tag = 'internal scratch']
  #allocation2 [shape = 'f32[16,16]{1,0:T(8,128)}', space=vmem, size = 0x2000, scoped, tag = 'scratch operand']
  #allocation3 [shape = 'f32[16,16]{1,0:T(8,128)}', space=vmem, size = 0x2000, scoped, tag = 'scratch operand']
  #allocation4 [shape = 'f32[16,16]{1,0:T(8,128)}', space=vmem, size = 0x2000, scoped, tag = 'scratch operand']
  %s0 = inlined_call_operand.hbm [shape: f32[16,1024], index: 0, kind: input, shape index: {}]
  %s1 = inlined_call_operand.hbm [shape: f32[16,1024], index: 1, kind: input, shape index: {}]
  %s2 = inlined_call_operand.hbm [shape: f32[8,16], index: 2, kind: input, shape index: {}]
  %s3 = inlined_call_operand.hbm [shape: f32[8,16], index: 3, kind: input, shape index: {}]
  %s4 = inlined_call_operand.hbm [shape: f32[8,8], index: 4, kind: input, shape index: {}]
  %s5 = inlined_call_operand.hbm [shape: f32[1,1], index: 5, kind: output, shape index: {}]
  %s6 = sld [smem:[#allocation0]]
  $region58: #{tpu_custom_call.1} parent=0
    _
  %s8 = ssub.s32 1, %s6
  %s9 = scalar_select 0, %s8, %s6
  $region1: #{tpu_custom_call.1} parent=0
    #allocation5 [shape = 'u8[65536]{0}', space=vmem, size = 0x10000, scoped, tag = 'input window, operand 0, single buffered']
    #allocation6 [shape = 's32[1]{0}', space=sflag, size = 0x4, scoped, tag = 'scoped memory for tpu_custom_call.1']
    #allocation7 [shape = 's32[1]{0}', space=sflag, size = 0x4, scoped, tag = 'scoped memory for tpu_custom_call.1']
    #allocation8 [shape = 'u8[65536]{0}', space=vmem, size = 0x10000, scoped, tag = 'input window, operand 1, single buffered']
    #allocation9 [shape = 's32[1]{0}', space=sflag, size = 0x4, scoped, tag = 'scoped memory for tpu_custom_call.1']
    #allocation10 [shape = 'u8[4096]{0}', space=vmem, size = 0x1000, scoped, tag = 'input window, operand 2, single buffered']
    #allocation11 [shape = 'u8[4096]{0}', space=vmem, size = 0x1000, scoped, tag = 'input window, operand 3, single buffered']
    #allocation12 [shape = 's32[1]{0}', space=sflag, size = 0x4, scoped, tag = 'scoped memory for tpu_custom_call.1']
    #allocation13 [shape = 'u8[4096]{0}', space=vmem, size = 0x1000, scoped, tag = 'input window, operand 4, single buffered']
    #allocation14 [shape = 'u8[512]{0}', space=smem, size = 0x200, scoped, tag = 'output window, operand 0, single buffered']
    %10 = vsyncpa [#allocation6], 0
    %11 = vsyncpa [#allocation9], 0
    %12 = vsyncpa [#allocation12], 0
    %13 = vsyncpa [#allocation7], 0
    // Predicated region
    $region2: #{tpu_custom_call.1} parent=1 // pred_check
      _
    $region3: #{tpu_custom_call.1} parent=1 // pred_check_branch
      %15 = sbr.rel (0) target = $region5
    $region4: #{tpu_custom_call.1} parent=1 // pred_region
      %s17 = ssub.s32 2048, 2048
      %18 = vsyncadd [#allocation6], %s17
      %s19 = sshll.u32 [#allocation5], 4
      %s20 = int_to_ptr.vmem [resolvable:$true] %s19
      %25 = dma.hbm_to_vmem [thread:$0]  %s0, 2048, %s20, [#allocation6], 1024, 1024, 64
    $region5: #{tpu_custom_call.1} parent=1 // pred_fallthru
      _
    // Predicated region
    $region6: #{tpu_custom_call.1} parent=1 // pred_check
      _
    $region7: #{tpu_custom_call.1} parent=1 // pred_check_branch
      %27 = sbr.rel (0) target = $region9
    $region8: #{tpu_custom_call.1} parent=1 // pred_region
      %s29 = ssub.s32 2048, 2048
      %30 = vsyncadd [#allocation9], %s29
      %s31 = sshll.u32 [#allocation8], 4
      %s32 = int_to_ptr.vmem [resolvable:$true] %s31
      %37 = dma.hbm_to_vmem [thread:$0]  %s1, 2048, %s32, [#allocation9], 1024, 1024, 64
    $region9: #{tpu_custom_call.1} parent=1 // pred_fallthru
      _
    // Predicated region
    $region10: #{tpu_custom_call.1} parent=1 // pred_check
      _
    $region11: #{tpu_custom_call.1} parent=1 // pred_check_branch
      %39 = sbr.rel (0) target = $region13
    $region12: #{tpu_custom_call.1} parent=1 // pred_region
      %s41 = ssub.s32 128, 128
      %42 = vsyncadd [#allocation9], %s41
      %s44 = sshll.u32 [#allocation10], 4
      %s45 = int_to_ptr.vmem [resolvable:$true] %s44
      %47 = dma.hbm_to_vmem [thread:$0]  %s2, 128, %s45, [#allocation9]
    $region13: #{tpu_custom_call.1} parent=1 // pred_fallthru
      _
    // Predicated region
    $region14: #{tpu_custom_call.1} parent=1 // pred_check
      _
    $region15: #{tpu_custom_call.1} parent=1 // pred_check_branch
      %49 = sbr.rel (0) target = $region17
    $region16: #{tpu_custom_call.1} parent=1 // pred_region
      %s51 = ssub.s32 128, 128
      %52 = vsyncadd [#allocation12], %s51
      %s54 = sshll.u32 [#allocation11], 4
      %s55 = int_to_ptr.vmem [resolvable:$true] %s54
      %57 = dma.hbm_to_vmem [thread:$0]  %s3, 128, %s55, [#allocation12]
    $region17: #{tpu_custom_call.1} parent=1 // pred_fallthru
      _
    // Predicated region
    $region18: #{tpu_custom_call.1} parent=1 // pred_check
      _
    $region19: #{tpu_custom_call.1} parent=1 // pred_check_branch
      %59 = sbr.rel (0) target = $region21
    $region20: #{tpu_custom_call.1} parent=1 // pred_region
      %s61 = ssub.s32 128, 128
      %62 = vsyncadd [#allocation12], %s61
      %s64 = sshll.u32 [#allocation13], 4
      %s65 = int_to_ptr.vmem [resolvable:$true] %s64
      %67 = dma.hbm_to_vmem [thread:$0]  %s4, 128, %s65, [#allocation12]
    $region21: #{tpu_custom_call.1} parent=1 // pred_fallthru
      _
    // Predicated region
    $region22: #{tpu_custom_call.1} parent=1 // pred_check
      _
    $region23: #{tpu_custom_call.1} parent=1 // pred_check_branch
      %69 = sbr.rel (0) target = $region25
    $region24: #{tpu_custom_call.1} parent=1 // pred_region
      %70 = dma.done [#allocation6], 2048
    $region25: #{tpu_custom_call.1} parent=1 // pred_fallthru
      _
    // Predicated region
    $region26: #{tpu_custom_call.1} parent=1 // pred_check
      _
    $region27: #{tpu_custom_call.1} parent=1 // pred_check_branch
      %72 = sbr.rel (0) target = $region29
    $region28: #{tpu_custom_call.1} parent=1 // pred_region
      %73 = dma.done [#allocation9], 2048
    $region29: #{tpu_custom_call.1} parent=1 // pred_fallthru
      _
    // Predicated region
    $region30: #{tpu_custom_call.1} parent=1 // pred_check
      _
    $region31: #{tpu_custom_call.1} parent=1 // pred_check_branch
      %75 = sbr.rel (0) target = $region33
    $region32: #{tpu_custom_call.1} parent=1 // pred_region
      %76 = dma.done [#allocation9], 128
    $region33: #{tpu_custom_call.1} parent=1 // pred_fallthru
      _
    // Predicated region
    $region34: #{tpu_custom_call.1} parent=1 // pred_check
      _
    $region35: #{tpu_custom_call.1} parent=1 // pred_check_branch
      %78 = sbr.rel (0) target = $region37
    $region36: #{tpu_custom_call.1} parent=1 // pred_region
      %79 = dma.done [#allocation12], 128
    $region37: #{tpu_custom_call.1} parent=1 // pred_fallthru
      _
    // Predicated region
    $region38: #{tpu_custom_call.1} parent=1 // pred_check
      _
    $region39: #{tpu_custom_call.1} parent=1 // pred_check_branch
      %81 = sbr.rel (0) target = $region41
    $region40: #{tpu_custom_call.1} parent=1 // pred_region
      %82 = dma.done [#allocation12], 128
    $region41: #{tpu_custom_call.1} parent=1 // pred_fallthru
      _
    %p83 = scmp.eq.s32.totalorder 0, 0
    // Predicated region
    $region42: #{tpu_custom_call.1} parent=1 // pred_check
      %p84 = pneg %p83
    $region43: #{tpu_custom_call.1} parent=1 // pred_check_branch
      %86 = sbr.rel (%p84) target = $region45
    $region44: #{tpu_custom_call.1} parent=1 // pred_region
      %vm87 = vcmask 130048
      %88 = vst.msk [vmem:[#allocation2] sm:$0xff] %vm87, 0.0
      %89 = vst.msk [vmem:[#allocation2 + $0x8] sm:$0xff] %vm87, 0.0
      %90 = vst.msk [vmem:[#allocation3] sm:$0xff] %vm87, 0.0
      %91 = vst.msk [vmem:[#allocation3 + $0x8] sm:$0xff] %vm87, 0.0
      %92 = vst.msk [vmem:[#allocation4] sm:$0xff] %vm87, 0.0
      %93 = vst.msk [vmem:[#allocation4 + $0x8] sm:$0xff] %vm87, 0.0
    $region45: #{tpu_custom_call.1} parent=1 // pred_fallthru
      _
    %v94 = vld [vmem:[#allocation5] sm:$0xff]
    %v95 = vld [vmem:[#allocation5 + $0x8] sm:$0xff]
    %v96 = vld [vmem:[#allocation5 + $0x10] sm:$0xff]
    %v97 = vld [vmem:[#allocation5 + $0x18] sm:$0xff]
    %v98 = vld [vmem:[#allocation5 + $0x20] sm:$0xff]
    %v99 = vld [vmem:[#allocation5 + $0x28] sm:$0xff]
    %v100 = vld [vmem:[#allocation5 + $0x30] sm:$0xff]
    %v101 = vld [vmem:[#allocation5 + $0x38] sm:$0xff]
    %v102 = vld [vmem:[#allocation5 + $0x40] sm:$0xff]
    %v103 = vld [vmem:[#allocation5 + $0x48] sm:$0xff]
    %v104 = vld [vmem:[#allocation5 + $0x50] sm:$0xff]
    %v105 = vld [vmem:[#allocation5 + $0x58] sm:$0xff]
    %v106 = vld [vmem:[#allocation5 + $0x60] sm:$0xff]
    %v107 = vld [vmem:[#allocation5 + $0x68] sm:$0xff]
    %v108 = vld [vmem:[#allocation5 + $0x70] sm:$0xff]
    %v109 = vld [vmem:[#allocation5 + $0x78] sm:$0xff]
    %v110 = vld [vmem:[#allocation8] sm:$0xff]
    %v111 = vld [vmem:[#allocation8 + $0x8] sm:$0xff]
    %v112 = vld [vmem:[#allocation8 + $0x10] sm:$0xff]
    %v113 = vld [vmem:[#allocation8 + $0x18] sm:$0xff]
    %v114 = vld [vmem:[#allocation8 + $0x20] sm:$0xff]
    %v115 = vld [vmem:[#allocation8 + $0x28] sm:$0xff]
    %v116 = vld [vmem:[#allocation8 + $0x30] sm:$0xff]
    %v117 = vld [vmem:[#allocation8 + $0x38] sm:$0xff]
    %v118 = vld [vmem:[#allocation8 + $0x40] sm:$0xff]
    %v119 = vld [vmem:[#allocation8 + $0x48] sm:$0xff]
    %v120 = vld [vmem:[#allocation8 + $0x50] sm:$0xff]
    %v121 = vld [vmem:[#allocation8 + $0x58] sm:$0xff]
    %v122 = vld [vmem:[#allocation8 + $0x60] sm:$0xff]
    %v123 = vld [vmem:[#allocation8 + $0x68] sm:$0xff]
    %v124 = vld [vmem:[#allocation8 + $0x70] sm:$0xff]
    %v125 = vld [vmem:[#allocation8 + $0x78] sm:$0xff]
    %v126 = vld [vmem:[#allocation2] sm:$0xff]
    %v127 = vld [vmem:[#allocation2 + $0x8] sm:$0xff]
    %128 = vmatprep.subr.mxu0 0.0
    %129 = vmatpush1.xpose.msra.mxu0 0.0
    %130 = vmatprep.subr.mxu0 0.0
    %131 = vmatpush1.xpose.msra.mxu0 0.0
    %132 = vmatprep.subr.mxu0 0.0
    %133 = vmatpush1.xpose.msra.mxu0 0.0
    %134 = vmatprep.subr.mxu0 0.0
    %135 = vmatpush1.xpose.msra.mxu0 0.0
    %136 = vmatprep.subr.mxu0 0.0
    %137 = vmatpush1.xpose.msra.mxu0 0.0
    %138 = vmatprep.subr.mxu0 0.0
    %139 = vmatpush1.xpose.msra.mxu0 0.0
    %140 = vmatprep.subr.mxu0 0.0
    %141 = vmatpush1.xpose.msra.mxu0 0.0
    %142 = vmatprep.subr.mxu0 0.0
    %143 = vmatpush1.xpose.msra.mxu0 0.0
    %144 = vmatprep.subr.mxu0 0.0
    %145 = vmatpush1.xpose.msra.mxu0 0.0
    %146 = vmatprep.subr.mxu0 0.0
    %147 = vmatpush1.xpose.msra.mxu0 0.0
    %148 = vmatprep.subr.mxu0 0.0
    %149 = vmatpush1.xpose.msra.mxu0 0.0
    %150 = vmatprep.subr.mxu0 0.0
    %151 = vmatpush1.xpose.msra.mxu0 0.0
    %152 = vmatprep.subr.mxu0 0.0
    %153 = vmatpush1.xpose.msra.mxu0 0.0
    %154 = vmatprep.subr.mxu0 0.0
    %155 = vmatpush1.xpose.msra.mxu0 0.0
    %156 = vmatprep.subr.mxu0 %v103
    %157 = vmatpush1.xpose.msra.mxu0 %v102
    %158 = vmatprep.subr.mxu0 %v95
    %159 = vmatpush1.xpose.msra.mxu0 %v94
    %160 = vmatprep.subr.mxu0 0.0
    %161 = vmatpush2.xpose.msra.mxu0 0.0
    %162 = vmatprep.subr.mxu0 0.0
    %163 = vmatpush2.xpose.msra.mxu0 0.0
    %164 = vmatprep.subr.mxu0 0.0
    %165 = vmatpush2.xpose.msra.mxu0 0.0
    %166 = vmatprep.subr.mxu0 0.0
    %167 = vmatpush2.xpose.msra.mxu0 0.0
    %168 = vmatprep.subr.mxu0 0.0
    %169 = vmatpush2.xpose.msra.mxu0 0.0
    %170 = vmatprep.subr.mxu0 0.0
    %171 = vmatpush2.xpose.msra.mxu0 0.0
    %172 = vmatprep.subr.mxu0 0.0
    %173 = vmatpush2.xpose.msra.mxu0 0.0
    %174 = vmatprep.subr.mxu0 0.0
    %175 = vmatpush2.xpose.msra.mxu0 0.0
    %176 = vmatprep.subr.mxu0 0.0
    %177 = vmatpush2.xpose.msra.mxu0 0.0
    %178 = vmatprep.subr.mxu0 0.0
    %179 = vmatpush2.xpose.msra.mxu0 0.0
    %180 = vmatprep.subr.mxu0 0.0
    %181 = vmatpush2.xpose.msra.mxu0 0.0
    %182 = vmatprep.subr.mxu0 0.0
    %183 = vmatpush2.xpose.msra.mxu0 0.0
    %184 = vmatprep.subr.mxu0 0.0
    %185 = vmatpush2.xpose.msra.mxu0 0.0
    %186 = vmatprep.subr.mxu0 0.0
    %187 = vmatpush2.xpose.msra.mxu0 0.0
    %188 = vmatprep.subr.mxu0 0.0
    %189 = vmatpush2.xpose.msra.mxu0 0.0
    %190 = vmatprep.subr.mxu0 0.0
    %191 = vmatpush2.xpose.msra.mxu0 0.0
    %192 = vmatprep.mubr.f32.mxu0 %v95
    %193 = vmatmul.mubr.f32.gmra.mxu0 %v94
    %v194 = vpop.f32.mrf.mxu0
    %v195 = vadd.f32 0.0, %v194
    %v196 = vpop.f32.mrf.mxu0
    %197 = vmatprep.mubr.f32.mxu0 %v103
    %198 = vmatmul.mubr.f32.gmra.mxu0 %v102
    %v199 = vpop.f32.mrf.mxu0
    %v200 = vadd.f32 0.0, %v199
    %v201 = vpop.f32.mrf.mxu0
    %202 = vdwg.mxu0
    %203 = vmatprep.subr.mxu0 0.0
    %204 = vmatpush1.xpose.msra.mxu0 0.0
    %205 = vmatprep.subr.mxu0 0.0
    %206 = vmatpush1.xpose.msra.mxu0 0.0
    %207 = vmatprep.subr.mxu0 0.0
    %208 = vmatpush1.xpose.msra.mxu0 0.0
    %209 = vmatprep.subr.mxu0 0.0
    %210 = vmatpush1.xpose.msra.mxu0 0.0
    %211 = vmatprep.subr.mxu0 0.0
    %212 = vmatpush1.xpose.msra.mxu0 0.0
    %213 = vmatprep.subr.mxu0 0.0
    %214 = vmatpush1.xpose.msra.mxu0 0.0
    %215 = vmatprep.subr.mxu0 0.0
    %216 = vmatpush1.xpose.msra.mxu0 0.0
    %217 = vmatprep.subr.mxu0 0.0
    %218 = vmatpush1.xpose.msra.mxu0 0.0
    %219 = vmatprep.subr.mxu0 0.0
    %220 = vmatpush1.xpose.msra.mxu0 0.0
    %221 = vmatprep.subr.mxu0 0.0
    %222 = vmatpush1.xpose.msra.mxu0 0.0
    %223 = vmatprep.subr.mxu0 0.0
    %224 = vmatpush1.xpose.msra.mxu0 0.0
    %225 = vmatprep.subr.mxu0 0.0
    %226 = vmatpush1.xpose.msra.mxu0 0.0
    %227 = vmatprep.subr.mxu0 0.0
    %228 = vmatpush1.xpose.msra.mxu0 0.0
    %229 = vmatprep.subr.mxu0 0.0
    %230 = vmatpush1.xpose.msra.mxu0 0.0
    %231 = vmatprep.subr.mxu0 %v105
    %232 = vmatpush1.xpose.msra.mxu0 %v104
    %233 = vmatprep.subr.mxu0 %v97
    %234 = vmatpush1.xpose.msra.mxu0 %v96
    %235 = vmatprep.subr.mxu0 0.0
    %236 = vmatpush2.xpose.msra.mxu0 0.0
    %237 = vmatprep.subr.mxu0 0.0
    %238 = vmatpush2.xpose.msra.mxu0 0.0
    %239 = vmatprep.subr.mxu0 0.0
    %240 = vmatpush2.xpose.msra.mxu0 0.0
    %241 = vmatprep.subr.mxu0 0.0
    %242 = vmatpush2.xpose.msra.mxu0 0.0
    %243 = vmatprep.subr.mxu0 0.0
    %244 = vmatpush2.xpose.msra.mxu0 0.0
    %245 = vmatprep.subr.mxu0 0.0
    %246 = vmatpush2.xpose.msra.mxu0 0.0
    %247 = vmatprep.subr.mxu0 0.0
    %248 = vmatpush2.xpose.msra.mxu0 0.0
    %249 = vmatprep.subr.mxu0 0.0
    %250 = vmatpush2.xpose.msra.mxu0 0.0
    %251 = vmatprep.subr.mxu0 0.0
    %252 = vmatpush2.xpose.msra.mxu0 0.0
    %253 = vmatprep.subr.mxu0 0.0
    %254 = vmatpush2.xpose.msra.mxu0 0.0
    %255 = vmatprep.subr.mxu0 0.0
    %256 = vmatpush2.xpose.msra.mxu0 0.0
    %257 = vmatprep.subr.mxu0 0.0
    %258 = vmatpush2.xpose.msra.mxu0 0.0
    %259 = vmatprep.subr.mxu0 0.0
    %260 = vmatpush2.xpose.msra.mxu0 0.0
    %261 = vmatprep.subr.mxu0 0.0
    %262 = vmatpush2.xpose.msra.mxu0 0.0
    %263 = vmatprep.subr.mxu0 0.0
    %264 = vmatpush2.xpose.msra.mxu0 0.0
    %265 = vmatprep.subr.mxu0 0.0
    %266 = vmatpush2.xpose.msra.mxu0 0.0
    %267 = vmatprep.mubr.f32.mxu0 %v97
    %268 = vmatmul.mubr.f32.gmra.mxu0 %v96
    %v269 = vpop.f32.mrf.mxu0
    %v270 = vadd.f32 %v195, %v269
    %v271 = vpop.f32.mrf.mxu0
    %272 = vmatprep.mubr.f32.mxu0 %v105
    %273 = vmatmul.mubr.f32.gmra.mxu0 %v104
    %v274 = vpop.f32.mrf.mxu0
    %v275 = vadd.f32 %v200, %v274
    %v276 = vpop.f32.mrf.mxu0
    %277 = vdwg.mxu0
    %278 = vmatprep.subr.mxu0 0.0
    %279 = vmatpush1.xpose.msra.mxu0 0.0
    %280 = vmatprep.subr.mxu0 0.0
    %281 = vmatpush1.xpose.msra.mxu0 0.0
    %282 = vmatprep.subr.mxu0 0.0
    %283 = vmatpush1.xpose.msra.mxu0 0.0
    %284 = vmatprep.subr.mxu0 0.0
    %285 = vmatpush1.xpose.msra.mxu0 0.0
    %286 = vmatprep.subr.mxu0 0.0
    %287 = vmatpush1.xpose.msra.mxu0 0.0
    %288 = vmatprep.subr.mxu0 0.0
    %289 = vmatpush1.xpose.msra.mxu0 0.0
    %290 = vmatprep.subr.mxu0 0.0
    %291 = vmatpush1.xpose.msra.mxu0 0.0
    %292 = vmatprep.subr.mxu0 0.0
    %293 = vmatpush1.xpose.msra.mxu0 0.0
    %294 = vmatprep.subr.mxu0 0.0
    %295 = vmatpush1.xpose.msra.mxu0 0.0
    %296 = vmatprep.subr.mxu0 0.0
    %297 = vmatpush1.xpose.msra.mxu0 0.0
    %298 = vmatprep.subr.mxu0 0.0
    %299 = vmatpush1.xpose.msra.mxu0 0.0
    %300 = vmatprep.subr.mxu0 0.0
    %301 = vmatpush1.xpose.msra.mxu0 0.0
    %302 = vmatprep.subr.mxu0 0.0
    %303 = vmatpush1.xpose.msra.mxu0 0.0
    %304 = vmatprep.subr.mxu0 0.0
    %305 = vmatpush1.xpose.msra.mxu0 0.0
    %306 = vmatprep.subr.mxu0 %v107
    %307 = vmatpush1.xpose.msra.mxu0 %v106
    %308 = vmatprep.subr.mxu0 %v99
    %309 = vmatpush1.xpose.msra.mxu0 %v98
    %310 = vmatprep.subr.mxu0 0.0
    %311 = vmatpush2.xpose.msra.mxu0 0.0
    %312 = vmatprep.subr.mxu0 0.0
    %313 = vmatpush2.xpose.msra.mxu0 0.0
    %314 = vmatprep.subr.mxu0 0.0
    %315 = vmatpush2.xpose.msra.mxu0 0.0
    %316 = vmatprep.subr.mxu0 0.0
    %317 = vmatpush2.xpose.msra.mxu0 0.0
    %318 = vmatprep.subr.mxu0 0.0
    %319 = vmatpush2.xpose.msra.mxu0 0.0
    %320 = vmatprep.subr.mxu0 0.0
    %321 = vmatpush2.xpose.msra.mxu0 0.0
    %322 = vmatprep.subr.mxu0 0.0
    %323 = vmatpush2.xpose.msra.mxu0 0.0
    %324 = vmatprep.subr.mxu0 0.0
    %325 = vmatpush2.xpose.msra.mxu0 0.0
    %326 = vmatprep.subr.mxu0 0.0
    %327 = vmatpush2.xpose.msra.mxu0 0.0
    %328 = vmatprep.subr.mxu0 0.0
    %329 = vmatpush2.xpose.msra.mxu0 0.0
    %330 = vmatprep.subr.mxu0 0.0
    %331 = vmatpush2.xpose.msra.mxu0 0.0
    %332 = vmatprep.subr.mxu0 0.0
    %333 = vmatpush2.xpose.msra.mxu0 0.0
    %334 = vmatprep.subr.mxu0 0.0
    %335 = vmatpush2.xpose.msra.mxu0 0.0
    %336 = vmatprep.subr.mxu0 0.0
    %337 = vmatpush2.xpose.msra.mxu0 0.0
    %338 = vmatprep.subr.mxu0 0.0
    %339 = vmatpush2.xpose.msra.mxu0 0.0
    %340 = vmatprep.subr.mxu0 0.0
    %341 = vmatpush2.xpose.msra.mxu0 0.0
    %342 = vmatprep.mubr.f32.mxu0 %v99
    %343 = vmatmul.mubr.f32.gmra.mxu0 %v98
    %v344 = vpop.f32.mrf.mxu0
    %v345 = vadd.f32 %v270, %v344
    %v346 = vpop.f32.mrf.mxu0
    %347 = vmatprep.mubr.f32.mxu0 %v107
    %348 = vmatmul.mubr.f32.gmra.mxu0 %v106
    %v349 = vpop.f32.mrf.mxu0
    %v350 = vadd.f32 %v275, %v349
    %v351 = vpop.f32.mrf.mxu0
    %352 = vdwg.mxu0
    %353 = vmatprep.subr.mxu0 0.0
    %354 = vmatpush1.xpose.msra.mxu0 0.0
    %355 = vmatprep.subr.mxu0 0.0
    %356 = vmatpush1.xpose.msra.mxu0 0.0
    %357 = vmatprep.subr.mxu0 0.0
    %358 = vmatpush1.xpose.msra.mxu0 0.0
    %359 = vmatprep.subr.mxu0 0.0
    %360 = vmatpush1.xpose.msra.mxu0 0.0
    %361 = vmatprep.subr.mxu0 0.0
    %362 = vmatpush1.xpose.msra.mxu0 0.0
    %363 = vmatprep.subr.mxu0 0.0
    %364 = vmatpush1.xpose.msra.mxu0 0.0
    %365 = vmatprep.subr.mxu0 0.0
    %366 = vmatpush1.xpose.msra.mxu0 0.0
    %367 = vmatprep.subr.mxu0 0.0
    %368 = vmatpush1.xpose.msra.mxu0 0.0
    %369 = vmatprep.subr.mxu0 0.0
    %370 = vmatpush1.xpose.msra.mxu0 0.0
    %371 = vmatprep.subr.mxu0 0.0
    %372 = vmatpush1.xpose.msra.mxu0 0.0
    %373 = vmatprep.subr.mxu0 0.0
    %374 = vmatpush1.xpose.msra.mxu0 0.0
    %375 = vmatprep.subr.mxu0 0.0
    %376 = vmatpush1.xpose.msra.mxu0 0.0
    %377 = vmatprep.subr.mxu0 0.0
    %378 = vmatpush1.xpose.msra.mxu0 0.0
    %379 = vmatprep.subr.mxu0 0.0
    %380 = vmatpush1.xpose.msra.mxu0 0.0
    %381 = vmatprep.subr.mxu0 %v109
    %382 = vmatpush1.xpose.msra.mxu0 %v108
    %383 = vmatprep.subr.mxu0 %v101
    %384 = vmatpush1.xpose.msra.mxu0 %v100
    %385 = vmatprep.subr.mxu0 0.0
    %386 = vmatpush2.xpose.msra.mxu0 0.0
    %387 = vmatprep.subr.mxu0 0.0
    %388 = vmatpush2.xpose.msra.mxu0 0.0
    %389 = vmatprep.subr.mxu0 0.0
    %390 = vmatpush2.xpose.msra.mxu0 0.0
    %391 = vmatprep.subr.mxu0 0.0
    %392 = vmatpush2.xpose.msra.mxu0 0.0
    %393 = vmatprep.subr.mxu0 0.0
    %394 = vmatpush2.xpose.msra.mxu0 0.0
    %395 = vmatprep.subr.mxu0 0.0
    %396 = vmatpush2.xpose.msra.mxu0 0.0
    %397 = vmatprep.subr.mxu0 0.0
    %398 = vmatpush2.xpose.msra.mxu0 0.0
    %399 = vmatprep.subr.mxu0 0.0
    %400 = vmatpush2.xpose.msra.mxu0 0.0
    %401 = vmatprep.subr.mxu0 0.0
    %402 = vmatpush2.xpose.msra.mxu0 0.0
    %403 = vmatprep.subr.mxu0 0.0
    %404 = vmatpush2.xpose.msra.mxu0 0.0
    %405 = vmatprep.subr.mxu0 0.0
    %406 = vmatpush2.xpose.msra.mxu0 0.0
    %407 = vmatprep.subr.mxu0 0.0
    %408 = vmatpush2.xpose.msra.mxu0 0.0
    %409 = vmatprep.subr.mxu0 0.0
    %410 = vmatpush2.xpose.msra.mxu0 0.0
    %411 = vmatprep.subr.mxu0 0.0
    %412 = vmatpush2.xpose.msra.mxu0 0.0
    %413 = vmatprep.subr.mxu0 0.0
    %414 = vmatpush2.xpose.msra.mxu0 0.0
    %415 = vmatprep.subr.mxu0 0.0
    %416 = vmatpush2.xpose.msra.mxu0 0.0
    %417 = vmatprep.mubr.f32.mxu0 %v101
    %418 = vmatmul.mubr.f32.gmra.mxu0 %v100
    %v419 = vpop.f32.mrf.mxu0
    %v420 = vadd.f32 %v345, %v419
    %v421 = vpop.f32.mrf.mxu0
    %422 = vmatprep.mubr.f32.mxu0 %v109
    %423 = vmatmul.mubr.f32.gmra.mxu0 %v108
    %v424 = vpop.f32.mrf.mxu0
    %v425 = vadd.f32 %v350, %v424
    %v426 = vpop.f32.mrf.mxu0
    %427 = vdwg.mxu0
    %v428 = vadd.f32 %v126, %v420
    %v429 = vadd.f32 %v127, %v425
    %vm430 = vcmask 130048
    %431 = vst.msk [vmem:[#allocation2] sm:$0xff] %vm430, %v428
    %432 = vst.msk [vmem:[#allocation2 + $0x8] sm:$0xff] %vm430, %v429
    %v433 = vld [vmem:[#allocation3] sm:$0xff]
    %v434 = vld [vmem:[#allocation3 + $0x8] sm:$0xff]
    %435 = vmatprep.subr.mxu0 0.0
    %436 = vmatpush1.xpose.msra.mxu0 0.0
    %437 = vmatprep.subr.mxu0 0.0
    %438 = vmatpush1.xpose.msra.mxu0 0.0
    %439 = vmatprep.subr.mxu0 0.0
    %440 = vmatpush1.xpose.msra.mxu0 0.0
    %441 = vmatprep.subr.mxu0 0.0
    %442 = vmatpush1.xpose.msra.mxu0 0.0
    %443 = vmatprep.subr.mxu0 0.0
    %444 = vmatpush1.xpose.msra.mxu0 0.0
    %445 = vmatprep.subr.mxu0 0.0
    %446 = vmatpush1.xpose.msra.mxu0 0.0
    %447 = vmatprep.subr.mxu0 0.0
    %448 = vmatpush1.xpose.msra.mxu0 0.0
    %449 = vmatprep.subr.mxu0 0.0
    %450 = vmatpush1.xpose.msra.mxu0 0.0
    %451 = vmatprep.subr.mxu0 0.0
    %452 = vmatpush1.xpose.msra.mxu0 0.0
    %453 = vmatprep.subr.mxu0 0.0
    %454 = vmatpush1.xpose.msra.mxu0 0.0
    %455 = vmatprep.subr.mxu0 0.0
    %456 = vmatpush1.xpose.msra.mxu0 0.0
    %457 = vmatprep.subr.mxu0 0.0
    %458 = vmatpush1.xpose.msra.mxu0 0.0
    %459 = vmatprep.subr.mxu0 0.0
    %460 = vmatpush1.xpose.msra.mxu0 0.0
    %461 = vmatprep.subr.mxu0 0.0
    %462 = vmatpush1.xpose.msra.mxu0 0.0
    %463 = vmatprep.subr.mxu0 %v119
    %464 = vmatpush1.xpose.msra.mxu0 %v118
    %465 = vmatprep.subr.mxu0 %v111
    %466 = vmatpush1.xpose.msra.mxu0 %v110
    %467 = vmatprep.subr.mxu0 0.0
    %468 = vmatpush2.xpose.msra.mxu0 0.0
    %469 = vmatprep.subr.mxu0 0.0
    %470 = vmatpush2.xpose.msra.mxu0 0.0
    %471 = vmatprep.subr.mxu0 0.0
    %472 = vmatpush2.xpose.msra.mxu0 0.0
    %473 = vmatprep.subr.mxu0 0.0
    %474 = vmatpush2.xpose.msra.mxu0 0.0
    %475 = vmatprep.subr.mxu0 0.0
    %476 = vmatpush2.xpose.msra.mxu0 0.0
    %477 = vmatprep.subr.mxu0 0.0
    %478 = vmatpush2.xpose.msra.mxu0 0.0
    %479 = vmatprep.subr.mxu0 0.0
    %480 = vmatpush2.xpose.msra.mxu0 0.0
    %481 = vmatprep.subr.mxu0 0.0
    %482 = vmatpush2.xpose.msra.mxu0 0.0
    %483 = vmatprep.subr.mxu0 0.0
    %484 = vmatpush2.xpose.msra.mxu0 0.0
    %485 = vmatprep.subr.mxu0 0.0
    %486 = vmatpush2.xpose.msra.mxu0 0.0
    %487 = vmatprep.subr.mxu0 0.0
    %488 = vmatpush2.xpose.msra.mxu0 0.0
    %489 = vmatprep.subr.mxu0 0.0
    %490 = vmatpush2.xpose.msra.mxu0 0.0
    %491 = vmatprep.subr.mxu0 0.0
    %492 = vmatpush2.xpose.msra.mxu0 0.0
    %493 = vmatprep.subr.mxu0 0.0
    %494 = vmatpush2.xpose.msra.mxu0 0.0
    %495 = vmatprep.subr.mxu0 0.0
    %496 = vmatpush2.xpose.msra.mxu0 0.0
    %497 = vmatprep.subr.mxu0 0.0
    %498 = vmatpush2.xpose.msra.mxu0 0.0
    %499 = vmatprep.mubr.f32.mxu0 %v111
    %500 = vmatmul.mubr.f32.gmra.mxu0 %v110
    %v501 = vpop.f32.mrf.mxu0
    %v502 = vadd.f32 0.0, %v501
    %v503 = vpop.f32.mrf.mxu0
    %504 = vmatprep.mubr.f32.mxu0 %v119
    %505 = vmatmul.mubr.f32.gmra.mxu0 %v118
    %v506 = vpop.f32.mrf.mxu0
    %v507 = vadd.f32 0.0, %v506
    %v508 = vpop.f32.mrf.mxu0
    %509 = vdwg.mxu0
    %510 = vmatprep.subr.mxu0 0.0
    %511 = vmatpush1.xpose.msra.mxu0 0.0
    %512 = vmatprep.subr.mxu0 0.0
    %513 = vmatpush1.xpose.msra.mxu0 0.0
    %514 = vmatprep.subr.mxu0 0.0
    %515 = vmatpush1.xpose.msra.mxu0 0.0
    %516 = vmatprep.subr.mxu0 0.0
    %517 = vmatpush1.xpose.msra.mxu0 0.0
    %518 = vmatprep.subr.mxu0 0.0
    %519 = vmatpush1.xpose.msra.mxu0 0.0
    %520 = vmatprep.subr.mxu0 0.0
    %521 = vmatpush1.xpose.msra.mxu0 0.0
    %522 = vmatprep.subr.mxu0 0.0
    %523 = vmatpush1.xpose.msra.mxu0 0.0
    %524 = vmatprep.subr.mxu0 0.0
    %525 = vmatpush1.xpose.msra.mxu0 0.0
    %526 = vmatprep.subr.mxu0 0.0
    %527 = vmatpush1.xpose.msra.mxu0 0.0
    %528 = vmatprep.subr.mxu0 0.0
    %529 = vmatpush1.xpose.msra.mxu0 0.0
    %530 = vmatprep.subr.mxu0 0.0
    %531 = vmatpush1.xpose.msra.mxu0 0.0
    %532 = vmatprep.subr.mxu0 0.0
    %533 = vmatpush1.xpose.msra.mxu0 0.0
    %534 = vmatprep.subr.mxu0 0.0
    %535 = vmatpush1.xpose.msra.mxu0 0.0
    %536 = vmatprep.subr.mxu0 0.0
    %537 = vmatpush1.xpose.msra.mxu0 0.0
    %538 = vmatprep.subr.mxu0 %v121
    %539 = vmatpush1.xpose.msra.mxu0 %v120
    %540 = vmatprep.subr.mxu0 %v113
    %541 = vmatpush1.xpose.msra.mxu0 %v112
    %542 = vmatprep.subr.mxu0 0.0
    %543 = vmatpush2.xpose.msra.mxu0 0.0
    %544 = vmatprep.subr.mxu0 0.0
    %545 = vmatpush2.xpose.msra.mxu0 0.0
    %546 = vmatprep.subr.mxu0 0.0
    %547 = vmatpush2.xpose.msra.mxu0 0.0
    %548 = vmatprep.subr.mxu0 0.0
    %549 = vmatpush2.xpose.msra.mxu0 0.0
    %550 = vmatprep.subr.mxu0 0.0
    %551 = vmatpush2.xpose.msra.mxu0 0.0
    %552 = vmatprep.subr.mxu0 0.0
    %553 = vmatpush2.xpose.msra.mxu0 0.0
    %554 = vmatprep.subr.mxu0 0.0
    %555 = vmatpush2.xpose.msra.mxu0 0.0
    %556 = vmatprep.subr.mxu0 0.0
    %557 = vmatpush2.xpose.msra.mxu0 0.0
    %558 = vmatprep.subr.mxu0 0.0
    %559 = vmatpush2.xpose.msra.mxu0 0.0
    %560 = vmatprep.subr.mxu0 0.0
    %561 = vmatpush2.xpose.msra.mxu0 0.0
    %562 = vmatprep.subr.mxu0 0.0
    %563 = vmatpush2.xpose.msra.mxu0 0.0
    %564 = vmatprep.subr.mxu0 0.0
    %565 = vmatpush2.xpose.msra.mxu0 0.0
    %566 = vmatprep.subr.mxu0 0.0
    %567 = vmatpush2.xpose.msra.mxu0 0.0
    %568 = vmatprep.subr.mxu0 0.0
    %569 = vmatpush2.xpose.msra.mxu0 0.0
    %570 = vmatprep.subr.mxu0 0.0
    %571 = vmatpush2.xpose.msra.mxu0 0.0
    %572 = vmatprep.subr.mxu0 0.0
    %573 = vmatpush2.xpose.msra.mxu0 0.0
    %574 = vmatprep.mubr.f32.mxu0 %v113
    %575 = vmatmul.mubr.f32.gmra.mxu0 %v112
    %v576 = vpop.f32.mrf.mxu0
    %v577 = vadd.f32 %v502, %v576
    %v578 = vpop.f32.mrf.mxu0
    %579 = vmatprep.mubr.f32.mxu0 %v121
    %580 = vmatmul.mubr.f32.gmra.mxu0 %v120
    %v581 = vpop.f32.mrf.mxu0
    %v582 = vadd.f32 %v507, %v581
    %v583 = vpop.f32.mrf.mxu0
    %584 = vdwg.mxu0
    %585 = vmatprep.subr.mxu0 0.0
    %586 = vmatpush1.xpose.msra.mxu0 0.0
    %587 = vmatprep.subr.mxu0 0.0
    %588 = vmatpush1.xpose.msra.mxu0 0.0
    %589 = vmatprep.subr.mxu0 0.0
    %590 = vmatpush1.xpose.msra.mxu0 0.0
    %591 = vmatprep.subr.mxu0 0.0
    %592 = vmatpush1.xpose.msra.mxu0 0.0
    %593 = vmatprep.subr.mxu0 0.0
    %594 = vmatpush1.xpose.msra.mxu0 0.0
    %595 = vmatprep.subr.mxu0 0.0
    %596 = vmatpush1.xpose.msra.mxu0 0.0
    %597 = vmatprep.subr.mxu0 0.0
    %598 = vmatpush1.xpose.msra.mxu0 0.0
    %599 = vmatprep.subr.mxu0 0.0
    %600 = vmatpush1.xpose.msra.mxu0 0.0
    %601 = vmatprep.subr.mxu0 0.0
    %602 = vmatpush1.xpose.msra.mxu0 0.0
    %603 = vmatprep.subr.mxu0 0.0
    %604 = vmatpush1.xpose.msra.mxu0 0.0
    %605 = vmatprep.subr.mxu0 0.0
    %606 = vmatpush1.xpose.msra.mxu0 0.0
    %607 = vmatprep.subr.mxu0 0.0
    %608 = vmatpush1.xpose.msra.mxu0 0.0
    %609 = vmatprep.subr.mxu0 0.0
    %610 = vmatpush1.xpose.msra.mxu0 0.0
    %611 = vmatprep.subr.mxu0 0.0
    %612 = vmatpush1.xpose.msra.mxu0 0.0
    %613 = vmatprep.subr.mxu0 %v123
    %614 = vmatpush1.xpose.msra.mxu0 %v122
    %615 = vmatprep.subr.mxu0 %v115
    %616 = vmatpush1.xpose.msra.mxu0 %v114
    %617 = vmatprep.subr.mxu0 0.0
    %618 = vmatpush2.xpose.msra.mxu0 0.0
    %619 = vmatprep.subr.mxu0 0.0
    %620 = vmatpush2.xpose.msra.mxu0 0.0
    %621 = vmatprep.subr.mxu0 0.0
    %622 = vmatpush2.xpose.msra.mxu0 0.0
    %623 = vmatprep.subr.mxu0 0.0
    %624 = vmatpush2.xpose.msra.mxu0 0.0
    %625 = vmatprep.subr.mxu0 0.0
    %626 = vmatpush2.xpose.msra.mxu0 0.0
    %627 = vmatprep.subr.mxu0 0.0
    %628 = vmatpush2.xpose.msra.mxu0 0.0
    %629 = vmatprep.subr.mxu0 0.0
    %630 = vmatpush2.xpose.msra.mxu0 0.0
    %631 = vmatprep.subr.mxu0 0.0
    %632 = vmatpush2.xpose.msra.mxu0 0.0
    %633 = vmatprep.subr.mxu0 0.0
    %634 = vmatpush2.xpose.msra.mxu0 0.0
    %635 = vmatprep.subr.mxu0 0.0
    %636 = vmatpush2.xpose.msra.mxu0 0.0
    %637 = vmatprep.subr.mxu0 0.0
    %638 = vmatpush2.xpose.msra.mxu0 0.0
    %639 = vmatprep.subr.mxu0 0.0
    %640 = vmatpush2.xpose.msra.mxu0 0.0
    %641 = vmatprep.subr.mxu0 0.0
    %642 = vmatpush2.xpose.msra.mxu0 0.0
    %643 = vmatprep.subr.mxu0 0.0
    %644 = vmatpush2.xpose.msra.mxu0 0.0
    %645 = vmatprep.subr.mxu0 0.0
    %646 = vmatpush2.xpose.msra.mxu0 0.0
    %647 = vmatprep.subr.mxu0 0.0
    %648 = vmatpush2.xpose.msra.mxu0 0.0
    %649 = vmatprep.mubr.f32.mxu0 %v115
    %650 = vmatmul.mubr.f32.gmra.mxu0 %v114
    %v651 = vpop.f32.mrf.mxu0
    %v652 = vadd.f32 %v577, %v651
    %v653 = vpop.f32.mrf.mxu0
    %654 = vmatprep.mubr.f32.mxu0 %v123
    %655 = vmatmul.mubr.f32.gmra.mxu0 %v122
    %v656 = vpop.f32.mrf.mxu0
    %v657 = vadd.f32 %v582, %v656
    %v658 = vpop.f32.mrf.mxu0
    %659 = vdwg.mxu0
    %660 = vmatprep.subr.mxu0 0.0
    %661 = vmatpush1.xpose.msra.mxu0 0.0
    %662 = vmatprep.subr.mxu0 0.0
    %663 = vmatpush1.xpose.msra.mxu0 0.0
    %664 = vmatprep.subr.mxu0 0.0
    %665 = vmatpush1.xpose.msra.mxu0 0.0
    %666 = vmatprep.subr.mxu0 0.0
    %667 = vmatpush1.xpose.msra.mxu0 0.0
    %668 = vmatprep.subr.mxu0 0.0
    %669 = vmatpush1.xpose.msra.mxu0 0.0
    %670 = vmatprep.subr.mxu0 0.0
    %671 = vmatpush1.xpose.msra.mxu0 0.0
    %672 = vmatprep.subr.mxu0 0.0
    %673 = vmatpush1.xpose.msra.mxu0 0.0
    %674 = vmatprep.subr.mxu0 0.0
    %675 = vmatpush1.xpose.msra.mxu0 0.0
    %676 = vmatprep.subr.mxu0 0.0
    %677 = vmatpush1.xpose.msra.mxu0 0.0
    %678 = vmatprep.subr.mxu0 0.0
    %679 = vmatpush1.xpose.msra.mxu0 0.0
    %680 = vmatprep.subr.mxu0 0.0
    %681 = vmatpush1.xpose.msra.mxu0 0.0
    %682 = vmatprep.subr.mxu0 0.0
    %683 = vmatpush1.xpose.msra.mxu0 0.0
    %684 = vmatprep.subr.mxu0 0.0
    %685 = vmatpush1.xpose.msra.mxu0 0.0
    %686 = vmatprep.subr.mxu0 0.0
    %687 = vmatpush1.xpose.msra.mxu0 0.0
    %688 = vmatprep.subr.mxu0 %v125
    %689 = vmatpush1.xpose.msra.mxu0 %v124
    %690 = vmatprep.subr.mxu0 %v117
    %691 = vmatpush1.xpose.msra.mxu0 %v116
    %692 = vmatprep.subr.mxu0 0.0
    %693 = vmatpush2.xpose.msra.mxu0 0.0
    %694 = vmatprep.subr.mxu0 0.0
    %695 = vmatpush2.xpose.msra.mxu0 0.0
    %696 = vmatprep.subr.mxu0 0.0
    %697 = vmatpush2.xpose.msra.mxu0 0.0
    %698 = vmatprep.subr.mxu0 0.0
    %699 = vmatpush2.xpose.msra.mxu0 0.0
    %700 = vmatprep.subr.mxu0 0.0
    %701 = vmatpush2.xpose.msra.mxu0 0.0
    %702 = vmatprep.subr.mxu0 0.0
    %703 = vmatpush2.xpose.msra.mxu0 0.0
    %704 = vmatprep.subr.mxu0 0.0
    %705 = vmatpush2.xpose.msra.mxu0 0.0
    %706 = vmatprep.subr.mxu0 0.0
    %707 = vmatpush2.xpose.msra.mxu0 0.0
    %708 = vmatprep.subr.mxu0 0.0
    %709 = vmatpush2.xpose.msra.mxu0 0.0
    %710 = vmatprep.subr.mxu0 0.0
    %711 = vmatpush2.xpose.msra.mxu0 0.0
    %712 = vmatprep.subr.mxu0 0.0
    %713 = vmatpush2.xpose.msra.mxu0 0.0
    %714 = vmatprep.subr.mxu0 0.0
    %715 = vmatpush2.xpose.msra.mxu0 0.0
    %716 = vmatprep.subr.mxu0 0.0
    %717 = vmatpush2.xpose.msra.mxu0 0.0
    %718 = vmatprep.subr.mxu0 0.0
    %719 = vmatpush2.xpose.msra.mxu0 0.0
    %720 = vmatprep.subr.mxu0 0.0
    %721 = vmatpush2.xpose.msra.mxu0 0.0
    %722 = vmatprep.subr.mxu0 0.0
    %723 = vmatpush2.xpose.msra.mxu0 0.0
    %724 = vmatprep.mubr.f32.mxu0 %v117
    %725 = vmatmul.mubr.f32.gmra.mxu0 %v116
    %v726 = vpop.f32.mrf.mxu0
    %v727 = vadd.f32 %v652, %v726
    %v728 = vpop.f32.mrf.mxu0
    %729 = vmatprep.mubr.f32.mxu0 %v125
    %730 = vmatmul.mubr.f32.gmra.mxu0 %v124
    %v731 = vpop.f32.mrf.mxu0
    %v732 = vadd.f32 %v657, %v731
    %v733 = vpop.f32.mrf.mxu0
    %734 = vdwg.mxu0
    %v735 = vadd.f32 %v433, %v727
    %v736 = vadd.f32 %v434, %v732
    %737 = vst.msk [vmem:[#allocation3] sm:$0xff] %vm430, %v735
    %738 = vst.msk [vmem:[#allocation3 + $0x8] sm:$0xff] %vm430, %v736
    %v739 = vld [vmem:[#allocation4] sm:$0xff]
    %v740 = vld [vmem:[#allocation4 + $0x8] sm:$0xff]
    %741 = vmatprep.subr.mxu0 0.0
    %742 = vmatpush1.xpose.msra.mxu0 0.0
    %743 = vmatprep.subr.mxu0 0.0
    %744 = vmatpush1.xpose.msra.mxu0 0.0
    %745 = vmatprep.subr.mxu0 0.0
    %746 = vmatpush1.xpose.msra.mxu0 0.0
    %747 = vmatprep.subr.mxu0 0.0
    %748 = vmatpush1.xpose.msra.mxu0 0.0
    %749 = vmatprep.subr.mxu0 0.0
    %750 = vmatpush1.xpose.msra.mxu0 0.0
    %751 = vmatprep.subr.mxu0 0.0
    %752 = vmatpush1.xpose.msra.mxu0 0.0
    %753 = vmatprep.subr.mxu0 0.0
    %754 = vmatpush1.xpose.msra.mxu0 0.0
    %755 = vmatprep.subr.mxu0 0.0
    %756 = vmatpush1.xpose.msra.mxu0 0.0
    %757 = vmatprep.subr.mxu0 0.0
    %758 = vmatpush1.xpose.msra.mxu0 0.0
    %759 = vmatprep.subr.mxu0 0.0
    %760 = vmatpush1.xpose.msra.mxu0 0.0
    %761 = vmatprep.subr.mxu0 0.0
    %762 = vmatpush1.xpose.msra.mxu0 0.0
    %763 = vmatprep.subr.mxu0 0.0
    %764 = vmatpush1.xpose.msra.mxu0 0.0
    %765 = vmatprep.subr.mxu0 0.0
    %766 = vmatpush1.xpose.msra.mxu0 0.0
    %767 = vmatprep.subr.mxu0 0.0
    %768 = vmatpush1.xpose.msra.mxu0 0.0
    %769 = vmatprep.subr.mxu0 %v119
    %770 = vmatpush1.xpose.msra.mxu0 %v118
    %771 = vmatprep.subr.mxu0 %v111
    %772 = vmatpush1.xpose.msra.mxu0 %v110
    %773 = vmatprep.subr.mxu0 0.0
    %774 = vmatpush2.xpose.msra.mxu0 0.0
    %775 = vmatprep.subr.mxu0 0.0
    %776 = vmatpush2.xpose.msra.mxu0 0.0
    %777 = vmatprep.subr.mxu0 0.0
    %778 = vmatpush2.xpose.msra.mxu0 0.0
    %779 = vmatprep.subr.mxu0 0.0
    %780 = vmatpush2.xpose.msra.mxu0 0.0
    %781 = vmatprep.subr.mxu0 0.0
    %782 = vmatpush2.xpose.msra.mxu0 0.0
    %783 = vmatprep.subr.mxu0 0.0
    %784 = vmatpush2.xpose.msra.mxu0 0.0
    %785 = vmatprep.subr.mxu0 0.0
    %786 = vmatpush2.xpose.msra.mxu0 0.0
    %787 = vmatprep.subr.mxu0 0.0
    %788 = vmatpush2.xpose.msra.mxu0 0.0
    %789 = vmatprep.subr.mxu0 0.0
    %790 = vmatpush2.xpose.msra.mxu0 0.0
    %791 = vmatprep.subr.mxu0 0.0
    %792 = vmatpush2.xpose.msra.mxu0 0.0
    %793 = vmatprep.subr.mxu0 0.0
    %794 = vmatpush2.xpose.msra.mxu0 0.0
    %795 = vmatprep.subr.mxu0 0.0
    %796 = vmatpush2.xpose.msra.mxu0 0.0
    %797 = vmatprep.subr.mxu0 0.0
    %798 = vmatpush2.xpose.msra.mxu0 0.0
    %799 = vmatprep.subr.mxu0 0.0
    %800 = vmatpush2.xpose.msra.mxu0 0.0
    %801 = vmatprep.subr.mxu0 0.0
    %802 = vmatpush2.xpose.msra.mxu0 0.0
    %803 = vmatprep.subr.mxu0 0.0
    %804 = vmatpush2.xpose.msra.mxu0 0.0
    %805 = vmatprep.mubr.f32.mxu0 %v95
    %806 = vmatmul.mubr.f32.gmra.mxu0 %v94
    %v807 = vpop.f32.mrf.mxu0
    %v808 = vadd.f32 0.0, %v807
    %v809 = vpop.f32.mrf.mxu0
    %810 = vmatprep.mubr.f32.mxu0 %v103
    %811 = vmatmul.mubr.f32.gmra.mxu0 %v102
    %v812 = vpop.f32.mrf.mxu0
    %v813 = vadd.f32 0.0, %v812
    %v814 = vpop.f32.mrf.mxu0
    %815 = vdwg.mxu0
    %816 = vmatprep.subr.mxu0 0.0
    %817 = vmatpush1.xpose.msra.mxu0 0.0
    %818 = vmatprep.subr.mxu0 0.0
    %819 = vmatpush1.xpose.msra.mxu0 0.0
    %820 = vmatprep.subr.mxu0 0.0
    %821 = vmatpush1.xpose.msra.mxu0 0.0
    %822 = vmatprep.subr.mxu0 0.0
    %823 = vmatpush1.xpose.msra.mxu0 0.0
    %824 = vmatprep.subr.mxu0 0.0
    %825 = vmatpush1.xpose.msra.mxu0 0.0
    %826 = vmatprep.subr.mxu0 0.0
    %827 = vmatpush1.xpose.msra.mxu0 0.0
    %828 = vmatprep.subr.mxu0 0.0
    %829 = vmatpush1.xpose.msra.mxu0 0.0
    %830 = vmatprep.subr.mxu0 0.0
    %831 = vmatpush1.xpose.msra.mxu0 0.0
    %832 = vmatprep.subr.mxu0 0.0
    %833 = vmatpush1.xpose.msra.mxu0 0.0
    %834 = vmatprep.subr.mxu0 0.0
    %835 = vmatpush1.xpose.msra.mxu0 0.0
    %836 = vmatprep.subr.mxu0 0.0
    %837 = vmatpush1.xpose.msra.mxu0 0.0
    %838 = vmatprep.subr.mxu0 0.0
    %839 = vmatpush1.xpose.msra.mxu0 0.0
    %840 = vmatprep.subr.mxu0 0.0
    %841 = vmatpush1.xpose.msra.mxu0 0.0
    %842 = vmatprep.subr.mxu0 0.0
    %843 = vmatpush1.xpose.msra.mxu0 0.0
    %844 = vmatprep.subr.mxu0 %v121
    %845 = vmatpush1.xpose.msra.mxu0 %v120
    %846 = vmatprep.subr.mxu0 %v113
    %847 = vmatpush1.xpose.msra.mxu0 %v112
    %848 = vmatprep.subr.mxu0 0.0
    %849 = vmatpush2.xpose.msra.mxu0 0.0
    %850 = vmatprep.subr.mxu0 0.0
    %851 = vmatpush2.xpose.msra.mxu0 0.0
    %852 = vmatprep.subr.mxu0 0.0
    %853 = vmatpush2.xpose.msra.mxu0 0.0
    %854 = vmatprep.subr.mxu0 0.0
    %855 = vmatpush2.xpose.msra.mxu0 0.0
    %856 = vmatprep.subr.mxu0 0.0
    %857 = vmatpush2.xpose.msra.mxu0 0.0
    %858 = vmatprep.subr.mxu0 0.0
    %859 = vmatpush2.xpose.msra.mxu0 0.0
    %860 = vmatprep.subr.mxu0 0.0
    %861 = vmatpush2.xpose.msra.mxu0 0.0
    %862 = vmatprep.subr.mxu0 0.0
    %863 = vmatpush2.xpose.msra.mxu0 0.0
    %864 = vmatprep.subr.mxu0 0.0
    %865 = vmatpush2.xpose.msra.mxu0 0.0
    %866 = vmatprep.subr.mxu0 0.0
    %867 = vmatpush2.xpose.msra.mxu0 0.0
    %868 = vmatprep.subr.mxu0 0.0
    %869 = vmatpush2.xpose.msra.mxu0 0.0
    %870 = vmatprep.subr.mxu0 0.0
    %871 = vmatpush2.xpose.msra.mxu0 0.0
    %872 = vmatprep.subr.mxu0 0.0
    %873 = vmatpush2.xpose.msra.mxu0 0.0
    %874 = vmatprep.subr.mxu0 0.0
    %875 = vmatpush2.xpose.msra.mxu0 0.0
    %876 = vmatprep.subr.mxu0 0.0
    %877 = vmatpush2.xpose.msra.mxu0 0.0
    %878 = vmatprep.subr.mxu0 0.0
    %879 = vmatpush2.xpose.msra.mxu0 0.0
    %880 = vmatprep.mubr.f32.mxu0 %v97
    %881 = vmatmul.mubr.f32.gmra.mxu0 %v96
    %v882 = vpop.f32.mrf.mxu0
    %v883 = vadd.f32 %v808, %v882
    %v884 = vpop.f32.mrf.mxu0
    %885 = vmatprep.mubr.f32.mxu0 %v105
    %886 = vmatmul.mubr.f32.gmra.mxu0 %v104
    %v887 = vpop.f32.mrf.mxu0
    %v888 = vadd.f32 %v813, %v887
    %v889 = vpop.f32.mrf.mxu0
    %890 = vdwg.mxu0
    %891 = vmatprep.subr.mxu0 0.0
    %892 = vmatpush1.xpose.msra.mxu0 0.0
    %893 = vmatprep.subr.mxu0 0.0
    %894 = vmatpush1.xpose.msra.mxu0 0.0
    %895 = vmatprep.subr.mxu0 0.0
    %896 = vmatpush1.xpose.msra.mxu0 0.0
    %897 = vmatprep.subr.mxu0 0.0
    %898 = vmatpush1.xpose.msra.mxu0 0.0
    %899 = vmatprep.subr.mxu0 0.0
    %900 = vmatpush1.xpose.msra.mxu0 0.0
    %901 = vmatprep.subr.mxu0 0.0
    %902 = vmatpush1.xpose.msra.mxu0 0.0
    %903 = vmatprep.subr.mxu0 0.0
    %904 = vmatpush1.xpose.msra.mxu0 0.0
    %905 = vmatprep.subr.mxu0 0.0
    %906 = vmatpush1.xpose.msra.mxu0 0.0
    %907 = vmatprep.subr.mxu0 0.0
    %908 = vmatpush1.xpose.msra.mxu0 0.0
    %909 = vmatprep.subr.mxu0 0.0
    %910 = vmatpush1.xpose.msra.mxu0 0.0
    %911 = vmatprep.subr.mxu0 0.0
    %912 = vmatpush1.xpose.msra.mxu0 0.0
    %913 = vmatprep.subr.mxu0 0.0
    %914 = vmatpush1.xpose.msra.mxu0 0.0
    %915 = vmatprep.subr.mxu0 0.0
    %916 = vmatpush1.xpose.msra.mxu0 0.0
    %917 = vmatprep.subr.mxu0 0.0
    %918 = vmatpush1.xpose.msra.mxu0 0.0
    %919 = vmatprep.subr.mxu0 %v123
    %920 = vmatpush1.xpose.msra.mxu0 %v122
    %921 = vmatprep.subr.mxu0 %v115
    %922 = vmatpush1.xpose.msra.mxu0 %v114
    %923 = vmatprep.subr.mxu0 0.0
    %924 = vmatpush2.xpose.msra.mxu0 0.0
    %925 = vmatprep.subr.mxu0 0.0
    %926 = vmatpush2.xpose.msra.mxu0 0.0
    %927 = vmatprep.subr.mxu0 0.0
    %928 = vmatpush2.xpose.msra.mxu0 0.0
    %929 = vmatprep.subr.mxu0 0.0
    %930 = vmatpush2.xpose.msra.mxu0 0.0
    %931 = vmatprep.subr.mxu0 0.0
    %932 = vmatpush2.xpose.msra.mxu0 0.0
    %933 = vmatprep.subr.mxu0 0.0
    %934 = vmatpush2.xpose.msra.mxu0 0.0
    %935 = vmatprep.subr.mxu0 0.0
    %936 = vmatpush2.xpose.msra.mxu0 0.0
    %937 = vmatprep.subr.mxu0 0.0
    %938 = vmatpush2.xpose.msra.mxu0 0.0
    %939 = vmatprep.subr.mxu0 0.0
    %940 = vmatpush2.xpose.msra.mxu0 0.0
    %941 = vmatprep.subr.mxu0 0.0
    %942 = vmatpush2.xpose.msra.mxu0 0.0
    %943 = vmatprep.subr.mxu0 0.0
    %944 = vmatpush2.xpose.msra.mxu0 0.0
    %945 = vmatprep.subr.mxu0 0.0
    %946 = vmatpush2.xpose.msra.mxu0 0.0
    %947 = vmatprep.subr.mxu0 0.0
    %948 = vmatpush2.xpose.msra.mxu0 0.0
    %949 = vmatprep.subr.mxu0 0.0
    %950 = vmatpush2.xpose.msra.mxu0 0.0
    %951 = vmatprep.subr.mxu0 0.0
    %952 = vmatpush2.xpose.msra.mxu0 0.0
    %953 = vmatprep.subr.mxu0 0.0
    %954 = vmatpush2.xpose.msra.mxu0 0.0
    %955 = vmatprep.mubr.f32.mxu0 %v99
    %956 = vmatmul.mubr.f32.gmra.mxu0 %v98
    %v957 = vpop.f32.mrf.mxu0
    %v958 = vadd.f32 %v883, %v957
    %v959 = vpop.f32.mrf.mxu0
    %960 = vmatprep.mubr.f32.mxu0 %v107
    %961 = vmatmul.mubr.f32.gmra.mxu0 %v106
    %v962 = vpop.f32.mrf.mxu0
    %v963 = vadd.f32 %v888, %v962
    %v964 = vpop.f32.mrf.mxu0
    %965 = vdwg.mxu0
    %966 = vmatprep.subr.mxu0 0.0
    %967 = vmatpush1.xpose.msra.mxu0 0.0
    %968 = vmatprep.subr.mxu0 0.0
    %969 = vmatpush1.xpose.msra.mxu0 0.0
    %970 = vmatprep.subr.mxu0 0.0
    %971 = vmatpush1.xpose.msra.mxu0 0.0
    %972 = vmatprep.subr.mxu0 0.0
    %973 = vmatpush1.xpose.msra.mxu0 0.0
    %974 = vmatprep.subr.mxu0 0.0
    %975 = vmatpush1.xpose.msra.mxu0 0.0
    %976 = vmatprep.subr.mxu0 0.0
    %977 = vmatpush1.xpose.msra.mxu0 0.0
    %978 = vmatprep.subr.mxu0 0.0
    %979 = vmatpush1.xpose.msra.mxu0 0.0
    %980 = vmatprep.subr.mxu0 0.0
    %981 = vmatpush1.xpose.msra.mxu0 0.0
    %982 = vmatprep.subr.mxu0 0.0
    %983 = vmatpush1.xpose.msra.mxu0 0.0
    %984 = vmatprep.subr.mxu0 0.0
    %985 = vmatpush1.xpose.msra.mxu0 0.0
    %986 = vmatprep.subr.mxu0 0.0
    %987 = vmatpush1.xpose.msra.mxu0 0.0
    %988 = vmatprep.subr.mxu0 0.0
    %989 = vmatpush1.xpose.msra.mxu0 0.0
    %990 = vmatprep.subr.mxu0 0.0
    %991 = vmatpush1.xpose.msra.mxu0 0.0
    %992 = vmatprep.subr.mxu0 0.0
    %993 = vmatpush1.xpose.msra.mxu0 0.0
    %994 = vmatprep.subr.mxu0 %v125
    %995 = vmatpush1.xpose.msra.mxu0 %v124
    %996 = vmatprep.subr.mxu0 %v117
    %997 = vmatpush1.xpose.msra.mxu0 %v116
    %998 = vmatprep.subr.mxu0 0.0
    %999 = vmatpush2.xpose.msra.mxu0 0.0
    %1000 = vmatprep.subr.mxu0 0.0
    %1001 = vmatpush2.xpose.msra.mxu0 0.0
    %1002 = vmatprep.subr.mxu0 0.0
    %1003 = vmatpush2.xpose.msra.mxu0 0.0
    %1004 = vmatprep.subr.mxu0 0.0
    %1005 = vmatpush2.xpose.msra.mxu0 0.0
    %1006 = vmatprep.subr.mxu0 0.0
    %1007 = vmatpush2.xpose.msra.mxu0 0.0
    %1008 = vmatprep.subr.mxu0 0.0
    %1009 = vmatpush2.xpose.msra.mxu0 0.0
    %1010 = vmatprep.subr.mxu0 0.0
    %1011 = vmatpush2.xpose.msra.mxu0 0.0
    %1012 = vmatprep.subr.mxu0 0.0
    %1013 = vmatpush2.xpose.msra.mxu0 0.0
    %1014 = vmatprep.subr.mxu0 0.0
    %1015 = vmatpush2.xpose.msra.mxu0 0.0
    %1016 = vmatprep.subr.mxu0 0.0
    %1017 = vmatpush2.xpose.msra.mxu0 0.0
    %1018 = vmatprep.subr.mxu0 0.0
    %1019 = vmatpush2.xpose.msra.mxu0 0.0
    %1020 = vmatprep.subr.mxu0 0.0
    %1021 = vmatpush2.xpose.msra.mxu0 0.0
    %1022 = vmatprep.subr.mxu0 0.0
    %1023 = vmatpush2.xpose.msra.mxu0 0.0
    %1024 = vmatprep.subr.mxu0 0.0
    %1025 = vmatpush2.xpose.msra.mxu0 0.0
    %1026 = vmatprep.subr.mxu0 0.0
    %1027 = vmatpush2.xpose.msra.mxu0 0.0
    %1028 = vmatprep.subr.mxu0 0.0
    %1029 = vmatpush2.xpose.msra.mxu0 0.0
    %1030 = vmatprep.mubr.f32.mxu0 %v101
    %1031 = vmatmul.mubr.f32.gmra.mxu0 %v100
    %v1032 = vpop.f32.mrf.mxu0
    %v1033 = vadd.f32 %v958, %v1032
    %v1034 = vpop.f32.mrf.mxu0
    %1035 = vmatprep.mubr.f32.mxu0 %v109
    %1036 = vmatmul.mubr.f32.gmra.mxu0 %v108
    %v1037 = vpop.f32.mrf.mxu0
    %v1038 = vadd.f32 %v963, %v1037
    %v1039 = vpop.f32.mrf.mxu0
    %1040 = vdwg.mxu0
    %v1041 = vadd.f32 %v739, %v1033
    %v1042 = vadd.f32 %v740, %v1038
    %1043 = vst.msk [vmem:[#allocation4] sm:$0xff] %vm430, %v1041
    %1044 = vst.msk [vmem:[#allocation4 + $0x8] sm:$0xff] %vm430, %v1042
    // Predicated region
    $region46: #{tpu_custom_call.1} parent=1 // pred_check
      %p1045 = pneg %p83
    $region47: #{tpu_custom_call.1} parent=1 // pred_check_branch
      %1047 = sbr.rel (%p1045) target = $region49
    $region48: #{tpu_custom_call.1} parent=1 // pred_region
      %v1048 = vld [vmem:[#allocation2] sm:$0xff]
      %v1049 = vld [vmem:[#allocation2 + $0x8] sm:$0xff]
      %v1050 = vld [vmem:[#allocation3] sm:$0xff]
      %v1051 = vld [vmem:[#allocation3 + $0x8] sm:$0xff]
      %v1052 = vld [vmem:[#allocation4] sm:$0xff]
      %v1053 = vld [vmem:[#allocation4 + $0x8] sm:$0xff]
      %v1054 = vlaneseq
      %v1055 = vshrl.u32 %v1054, 7
      %v1056 = vadd.s32 %v1055, 8
      %v1057 = vlaneseq
      %v1058 = vand.u32 %v1057, 127
      %vm1059 = vcmp.eq.s32.totalorder %v1055, %v1058
      %vm1060 = vcmp.eq.s32.totalorder %v1056, %v1058
      %v1061 = vsel %vm1059, 1, 0
      %v1062 = vsel %vm1060, 1, 0
      %v1063 = vcvt.s32.f32 %v1061
      %v1064 = vcvt.s32.f32 %v1062
      %v1065 = vmul.f32 %v1048, %v1063
      %v1066 = vmul.f32 %v1049, %v1064
      %v1067 = vmul.f32 %v1050, %v1063
      %v1068 = vmul.f32 %v1051, %v1064
      %v1069 = vsel %vm430, %v1065, 0.0
      %1070 = vadd.xlane.f32.xlu0 %v1069
      %v1071 = vpop.xlane.xlu0 %1070
      %v1072 = vsel %vm430, %v1066, 0.0
      %1073 = vadd.xlane.f32.xlu0 %v1072
      %v1074 = vpop.xlane.xlu0 %1073
      %v1075 = vadd.f32 %v1069, %v1072
      %v1076 = vrot.slane %v1075, 4
      %v1077 = vadd.f32 %v1075, %v1076
      %v1078 = vrot.slane %v1077, 2
      %v1079 = vadd.f32 %v1077, %v1078
      %v1080 = vrot.slane %v1079, 1
      %v1081 = vadd.f32 %v1079, %v1080
      %v1082 = vsel %vm430, %v1067, 0.0
      %1083 = vadd.xlane.f32.xlu0 %v1082
      %v1084 = vpop.xlane.xlu0 %1083
      %v1085 = vsel %vm430, %v1068, 0.0
      %1086 = vadd.xlane.f32.xlu0 %v1085
      %v1087 = vpop.xlane.xlu0 %1086
      %v1088 = vadd.f32 %v1082, %v1085
      %v1089 = vrot.slane %v1088, 4
      %v1090 = vadd.f32 %v1088, %v1089
      %v1091 = vrot.slane %v1090, 2
      %v1092 = vadd.f32 %v1090, %v1091
      %v1093 = vrot.slane %v1092, 1
      %v1094 = vadd.f32 %v1092, %v1093
      %v1095 = vadd.f32 %v1071, %v1094
      %v1096 = vadd.f32 %v1074, %v1094
      %v1097 = vmul.f32 %v1052, 2.0
      %v1098 = vmul.f32 %v1053, 2.0
      %v1099 = vsub.f32 %v1095, %v1097
      %v1100 = vsub.f32 %v1096, %v1098
      %v1101 = vmax.f32 %v1099, 1e-12
      %v1102 = vmax.f32 %v1100, 1e-12
      %vm1103 = vcmp.lt.s32.totalorder %v1055, 16
      %vm1104 = vcmp.lt.s32.totalorder %v1056, 16
      %vm1105 = vcmp.lt.s32.totalorder %v1058, 16
      %vm1106 = vmand %vm1103, %vm1105
      %vm1107 = vmand %vm1104, %vm1105
      %v1108 = vsel %vm1106, 1, 0
      %v1109 = vsel %vm1107, 1, 0
      %v1110 = vcvt.s32.f32 %v1108
      %v1111 = vcvt.s32.f32 %v1109
      %v1112 = vmul.f32 %v1101, %v1110
      %v1113 = vmul.f32 %v1102, %v1111
      %v1114 = vsel %vm430, %v1112, 0.0
      %v1115 = vsel %vm430, %v1113, 0.0
      %v1116 = vadd.f32 %v1114, %v1115
      %1117 = vadd.xlane.f32.xlu0 %v1116
      %v1118 = vpop.xlane.xlu0 %1117
      %v1119 = vrot.slane %v1118, 4
      %v1120 = vadd.f32 %v1118, %v1119
      %v1121 = vrot.slane %v1120, 2
      %v1122 = vadd.f32 %v1120, %v1121
      %v1123 = vrot.slane %v1122, 1
      %v1124 = vadd.f32 %v1122, %v1123
      %s1125 = vtos %v1124
      %v1126 = vrcp.pop 256.0
      %s1127 = vtos %v1126
      %s1128 = smul.f32 %s1125, %s1127
      %s1129 = smul.f32 %s1128, 2.0
      %v1130 = vstv %s1129
      %v1131 = vrcp.pop %v1130
      %s1132 = vtos %v1131
      %v1133 = vadd.f32 %v1071, %v1081
      %v1134 = vadd.f32 %v1074, %v1081
      %v1135 = vmul.f32 %v1048, 2.0
      %v1136 = vmul.f32 %v1049, 2.0
      %v1137 = vsub.f32 %v1133, %v1135
      %v1138 = vsub.f32 %v1134, %v1136
      %v1139 = vmax.f32 %v1137, 1e-12
      %v1140 = vmax.f32 %v1138, 1e-12
      %v1141 = vadd.f32 %v1084, %v1094
      %v1142 = vadd.f32 %v1087, %v1094
      %v1143 = vmul.f32 %v1050, 2.0
      %v1144 = vmul.f32 %v1051, 2.0
      %v1145 = vsub.f32 %v1141, %v1143
      %v1146 = vsub.f32 %v1142, %v1144
      %v1147 = vmax.f32 %v1145, 1e-12
      %v1148 = vmax.f32 %v1146, 1e-12
      %v1149 = vsub.f32 0.0, %v1101
      %v1150 = vsub.f32 0.0, %v1102
      %v1151 = vstv %s1132
      %v1152 = vmul.f32 %v1149, %v1151
      %v1153 = vmul.f32 %v1150, %v1151
      %v1154 = vmul.f32 %v1152, 1.442695
      %v1155 = vpow.pop %v1154
      %v1156 = vmul.f32 %v1153, 1.442695
      %v1157 = vpow.pop %v1156
      %v1158 = vsub.f32 0.0, %v1139
      %v1159 = vsub.f32 0.0, %v1140
      %v1160 = vmul.f32 %v1158, %v1151
      %v1161 = vmul.f32 %v1159, %v1151
      %v1162 = vmul.f32 %v1160, 1.442695
      %v1163 = vpow.pop %v1162
      %v1164 = vmul.f32 %v1161, 1.442695
      %v1165 = vpow.pop %v1164
      %v1166 = vsub.f32 0.0, %v1147
      %v1167 = vsub.f32 0.0, %v1148
      %v1168 = vmul.f32 %v1166, %v1151
      %v1169 = vmul.f32 %v1167, %v1151
      %v1170 = vmul.f32 %v1168, 1.442695
      %v1171 = vpow.pop %v1170
      %v1172 = vmul.f32 %v1169, 1.442695
      %v1173 = vpow.pop %v1172
      %v1174 = vld [vmem:[#allocation10] sm:$0xff]
      %v1175 = vld [vmem:[#allocation11] sm:$0xff]
      %v1176 = vld [vmem:[#allocation13] sm:$0xff]
      %v1178 = vsel %vm430, %v1174, 0
      %1180 = vmatprep.subr.mxu0 0.0
      %1181 = vmatpush1.msra.mxu0 0.0
      %1182 = vmatprep.subr.mxu0 0.0
      %1183 = vmatpush1.msra.mxu0 0.0
      %1184 = vmatprep.subr.mxu0 0.0
      %1185 = vmatpush1.msra.mxu0 0.0
      %1186 = vmatprep.subr.mxu0 0.0
      %1187 = vmatpush1.msra.mxu0 0.0
      %1188 = vmatprep.subr.mxu0 0.0
      %1189 = vmatpush1.msra.mxu0 0.0
      %1190 = vmatprep.subr.mxu0 0.0
      %1191 = vmatpush1.msra.mxu0 0.0
      %1192 = vmatprep.subr.mxu0 0.0
      %1193 = vmatpush1.msra.mxu0 0.0
      %1194 = vmatprep.subr.mxu0 0.0
      %1195 = vmatpush1.msra.mxu0 0.0
      %1196 = vmatprep.subr.mxu0 0.0
      %1197 = vmatpush1.msra.mxu0 0.0
      %1198 = vmatprep.subr.mxu0 0.0
      %1199 = vmatpush1.msra.mxu0 0.0
      %1200 = vmatprep.subr.mxu0 0.0
      %1201 = vmatpush1.msra.mxu0 0.0
      %1202 = vmatprep.subr.mxu0 0.0
      %1203 = vmatpush1.msra.mxu0 0.0
      %1204 = vmatprep.subr.mxu0 0.0
      %1205 = vmatpush1.msra.mxu0 0.0
      %1206 = vmatprep.subr.mxu0 0.0
      %1207 = vmatpush1.msra.mxu0 0.0
      %1208 = vmatprep.subr.mxu0 0.0
      %1209 = vmatpush1.msra.mxu0 %v1165
      %1210 = vmatprep.subr.mxu0 0.0
      %1211 = vmatpush1.msra.mxu0 %v1163
      %1212 = vmatprep.subr.mxu0 0.0
      %1213 = vmatpush2.msra.mxu0 0.0
      %1214 = vmatprep.subr.mxu0 0.0
      %1215 = vmatpush2.msra.mxu0 0.0
      %1216 = vmatprep.subr.mxu0 0.0
      %1217 = vmatpush2.msra.mxu0 0.0
      %1218 = vmatprep.subr.mxu0 0.0
      %1219 = vmatpush2.msra.mxu0 0.0
      %1220 = vmatprep.subr.mxu0 0.0
      %1221 = vmatpush2.msra.mxu0 0.0
      %1222 = vmatprep.subr.mxu0 0.0
      %1223 = vmatpush2.msra.mxu0 0.0
      %1224 = vmatprep.subr.mxu0 0.0
      %1225 = vmatpush2.msra.mxu0 0.0
      %1226 = vmatprep.subr.mxu0 0.0
      %1227 = vmatpush2.msra.mxu0 0.0
      %1228 = vmatprep.subr.mxu0 0.0
      %1229 = vmatpush2.msra.mxu0 0.0
      %1230 = vmatprep.subr.mxu0 0.0
      %1231 = vmatpush2.msra.mxu0 0.0
      %1232 = vmatprep.subr.mxu0 0.0
      %1233 = vmatpush2.msra.mxu0 0.0
      %1234 = vmatprep.subr.mxu0 0.0
      %1235 = vmatpush2.msra.mxu0 0.0
      %1236 = vmatprep.subr.mxu0 0.0
      %1237 = vmatpush2.msra.mxu0 0.0
      %1238 = vmatprep.subr.mxu0 0.0
      %1239 = vmatpush2.msra.mxu0 0.0
      %1240 = vmatprep.subr.mxu0 0.0
      %1241 = vmatpush2.msra.mxu0 0.0
      %1242 = vmatprep.subr.mxu0 0.0
      %1243 = vmatpush2.msra.mxu0 0.0
      %1244 = vmatprep.mubr.f32.mxu0 0.0
      %1245 = vmatmul.mubr.f32.gmra.mxu0 %v1178
      %v1246 = vpop.f32.mrf.mxu0
      %v1247 = vadd.f32 0.0, %v1246
      %v1248 = vpop.f32.mrf.mxu0
      %1249 = vdwg.mxu0
      %v1250 = vmul.f32 %v1247, %v1174
      %v1251 = vsel %vm430, %v1250, 0.0
      %1252 = vadd.xlane.f32.xlu0 %v1251
      %v1253 = vpop.xlane.xlu0 %1252
      %v1255 = vsel %vm430, %v1175, 0
      %1257 = vmatprep.subr.mxu0 0.0
      %1258 = vmatpush1.msra.mxu0 0.0
      %1259 = vmatprep.subr.mxu0 0.0
      %1260 = vmatpush1.msra.mxu0 0.0
      %1261 = vmatprep.subr.mxu0 0.0
      %1262 = vmatpush1.msra.mxu0 0.0
      %1263 = vmatprep.subr.mxu0 0.0
      %1264 = vmatpush1.msra.mxu0 0.0
      %1265 = vmatprep.subr.mxu0 0.0
      %1266 = vmatpush1.msra.mxu0 0.0
      %1267 = vmatprep.subr.mxu0 0.0
      %1268 = vmatpush1.msra.mxu0 0.0
      %1269 = vmatprep.subr.mxu0 0.0
      %1270 = vmatpush1.msra.mxu0 0.0
      %1271 = vmatprep.subr.mxu0 0.0
      %1272 = vmatpush1.msra.mxu0 0.0
      %1273 = vmatprep.subr.mxu0 0.0
      %1274 = vmatpush1.msra.mxu0 0.0
      %1275 = vmatprep.subr.mxu0 0.0
      %1276 = vmatpush1.msra.mxu0 0.0
      %1277 = vmatprep.subr.mxu0 0.0
      %1278 = vmatpush1.msra.mxu0 0.0
      %1279 = vmatprep.subr.mxu0 0.0
      %1280 = vmatpush1.msra.mxu0 0.0
      %1281 = vmatprep.subr.mxu0 0.0
      %1282 = vmatpush1.msra.mxu0 0.0
      %1283 = vmatprep.subr.mxu0 0.0
      %1284 = vmatpush1.msra.mxu0 0.0
      %1285 = vmatprep.subr.mxu0 0.0
      %1286 = vmatpush1.msra.mxu0 %v1173
      %1287 = vmatprep.subr.mxu0 0.0
      %1288 = vmatpush1.msra.mxu0 %v1171
      %1289 = vmatprep.subr.mxu0 0.0
      %1290 = vmatpush2.msra.mxu0 0.0
      %1291 = vmatprep.subr.mxu0 0.0
      %1292 = vmatpush2.msra.mxu0 0.0
      %1293 = vmatprep.subr.mxu0 0.0
      %1294 = vmatpush2.msra.mxu0 0.0
      %1295 = vmatprep.subr.mxu0 0.0
      %1296 = vmatpush2.msra.mxu0 0.0
      %1297 = vmatprep.subr.mxu0 0.0
      %1298 = vmatpush2.msra.mxu0 0.0
      %1299 = vmatprep.subr.mxu0 0.0
      %1300 = vmatpush2.msra.mxu0 0.0
      %1301 = vmatprep.subr.mxu0 0.0
      %1302 = vmatpush2.msra.mxu0 0.0
      %1303 = vmatprep.subr.mxu0 0.0
      %1304 = vmatpush2.msra.mxu0 0.0
      %1305 = vmatprep.subr.mxu0 0.0
      %1306 = vmatpush2.msra.mxu0 0.0
      %1307 = vmatprep.subr.mxu0 0.0
      %1308 = vmatpush2.msra.mxu0 0.0
      %1309 = vmatprep.subr.mxu0 0.0
      %1310 = vmatpush2.msra.mxu0 0.0
      %1311 = vmatprep.subr.mxu0 0.0
      %1312 = vmatpush2.msra.mxu0 0.0
      %1313 = vmatprep.subr.mxu0 0.0
      %1314 = vmatpush2.msra.mxu0 0.0
      %1315 = vmatprep.subr.mxu0 0.0
      %1316 = vmatpush2.msra.mxu0 0.0
      %1317 = vmatprep.subr.mxu0 0.0
      %1318 = vmatpush2.msra.mxu0 0.0
      %1319 = vmatprep.subr.mxu0 0.0
      %1320 = vmatpush2.msra.mxu0 0.0
      %1321 = vmatprep.mubr.f32.mxu0 0.0
      %1322 = vmatmul.mubr.f32.gmra.mxu0 %v1255
      %v1323 = vpop.f32.mrf.mxu0
      %v1324 = vadd.f32 0.0, %v1323
      %v1325 = vpop.f32.mrf.mxu0
      %1326 = vdwg.mxu0
      %v1327 = vmul.f32 %v1324, %v1175
      %v1328 = vsel %vm430, %v1327, 0.0
      %1329 = vadd.xlane.f32.xlu0 %v1328
      %v1330 = vpop.xlane.xlu0 %1329
      %1331 = vmatprep.subr.mxu0 0.0
      %1332 = vmatpush1.msra.mxu0 0.0
      %1333 = vmatprep.subr.mxu0 0.0
      %1334 = vmatpush1.msra.mxu0 0.0
      %1335 = vmatprep.subr.mxu0 0.0
      %1336 = vmatpush1.msra.mxu0 0.0
      %1337 = vmatprep.subr.mxu0 0.0
      %1338 = vmatpush1.msra.mxu0 0.0
      %1339 = vmatprep.subr.mxu0 0.0
      %1340 = vmatpush1.msra.mxu0 0.0
      %1341 = vmatprep.subr.mxu0 0.0
      %1342 = vmatpush1.msra.mxu0 0.0
      %1343 = vmatprep.subr.mxu0 0.0
      %1344 = vmatpush1.msra.mxu0 0.0
      %1345 = vmatprep.subr.mxu0 0.0
      %1346 = vmatpush1.msra.mxu0 0.0
      %1347 = vmatprep.subr.mxu0 0.0
      %1348 = vmatpush1.msra.mxu0 0.0
      %1349 = vmatprep.subr.mxu0 0.0
      %1350 = vmatpush1.msra.mxu0 0.0
      %1351 = vmatprep.subr.mxu0 0.0
      %1352 = vmatpush1.msra.mxu0 0.0
      %1353 = vmatprep.subr.mxu0 0.0
      %1354 = vmatpush1.msra.mxu0 0.0
      %1355 = vmatprep.subr.mxu0 0.0
      %1356 = vmatpush1.msra.mxu0 0.0
      %1357 = vmatprep.subr.mxu0 0.0
      %1358 = vmatpush1.msra.mxu0 0.0
      %1359 = vmatprep.subr.mxu0 0.0
      %1360 = vmatpush1.msra.mxu0 %v1157
      %1361 = vmatprep.subr.mxu0 0.0
      %1362 = vmatpush1.msra.mxu0 %v1155
      %1363 = vmatprep.subr.mxu0 0.0
      %1364 = vmatpush2.msra.mxu0 0.0
      %1365 = vmatprep.subr.mxu0 0.0
      %1366 = vmatpush2.msra.mxu0 0.0
      %1367 = vmatprep.subr.mxu0 0.0
      %1368 = vmatpush2.msra.mxu0 0.0
      %1369 = vmatprep.subr.mxu0 0.0
      %1370 = vmatpush2.msra.mxu0 0.0
      %1371 = vmatprep.subr.mxu0 0.0
      %1372 = vmatpush2.msra.mxu0 0.0
      %1373 = vmatprep.subr.mxu0 0.0
      %1374 = vmatpush2.msra.mxu0 0.0
      %1375 = vmatprep.subr.mxu0 0.0
      %1376 = vmatpush2.msra.mxu0 0.0
      %1377 = vmatprep.subr.mxu0 0.0
      %1378 = vmatpush2.msra.mxu0 0.0
      %1379 = vmatprep.subr.mxu0 0.0
      %1380 = vmatpush2.msra.mxu0 0.0
      %1381 = vmatprep.subr.mxu0 0.0
      %1382 = vmatpush2.msra.mxu0 0.0
      %1383 = vmatprep.subr.mxu0 0.0
      %1384 = vmatpush2.msra.mxu0 0.0
      %1385 = vmatprep.subr.mxu0 0.0
      %1386 = vmatpush2.msra.mxu0 0.0
      %1387 = vmatprep.subr.mxu0 0.0
      %1388 = vmatpush2.msra.mxu0 0.0
      %1389 = vmatprep.subr.mxu0 0.0
      %1390 = vmatpush2.msra.mxu0 0.0
      %1391 = vmatprep.subr.mxu0 0.0
      %1392 = vmatpush2.msra.mxu0 0.0
      %1393 = vmatprep.subr.mxu0 0.0
      %1394 = vmatpush2.msra.mxu0 0.0
      %1395 = vmatprep.mubr.f32.mxu0 0.0
      %1396 = vmatmul.mubr.f32.gmra.mxu0 %v1178
      %v1397 = vpop.f32.mrf.mxu0
      %v1398 = vadd.f32 0.0, %v1397
      %v1399 = vpop.f32.mrf.mxu0
      %1400 = vdwg.mxu0
      %v1402 = vsel %vm430, %v1398, 0
      %1404 = vmatprep.subr.mxu0 0.0
      %1405 = vmatpush1.xpose.msra.mxu0 0.0
      %1406 = vmatprep.subr.mxu0 0.0
      %1407 = vmatpush1.xpose.msra.mxu0 0.0
      %1408 = vmatprep.subr.mxu0 0.0
      %1409 = vmatpush1.xpose.msra.mxu0 0.0
      %1410 = vmatprep.subr.mxu0 0.0
      %1411 = vmatpush1.xpose.msra.mxu0 0.0
      %1412 = vmatprep.subr.mxu0 0.0
      %1413 = vmatpush1.xpose.msra.mxu0 0.0
      %1414 = vmatprep.subr.mxu0 0.0
      %1415 = vmatpush1.xpose.msra.mxu0 0.0
      %1416 = vmatprep.subr.mxu0 0.0
      %1417 = vmatpush1.xpose.msra.mxu0 0.0
      %1418 = vmatprep.subr.mxu0 0.0
      %1419 = vmatpush1.xpose.msra.mxu0 0.0
      %1420 = vmatprep.subr.mxu0 0.0
      %1421 = vmatpush1.xpose.msra.mxu0 0.0
      %1422 = vmatprep.subr.mxu0 0.0
      %1423 = vmatpush1.xpose.msra.mxu0 0.0
      %1424 = vmatprep.subr.mxu0 0.0
      %1425 = vmatpush1.xpose.msra.mxu0 0.0
      %1426 = vmatprep.subr.mxu0 0.0
      %1427 = vmatpush1.xpose.msra.mxu0 0.0
      %1428 = vmatprep.subr.mxu0 0.0
      %1429 = vmatpush1.xpose.msra.mxu0 0.0
      %1430 = vmatprep.subr.mxu0 0.0
      %1431 = vmatpush1.xpose.msra.mxu0 0.0
      %1432 = vmatprep.subr.mxu0 0.0
      %1433 = vmatpush1.xpose.msra.mxu0 0.0
      %1434 = vmatprep.subr.mxu0 0.0
      %1435 = vmatpush1.xpose.msra.mxu0 %v1255
      %1436 = vmatprep.subr.mxu0 0.0
      %1437 = vmatpush2.xpose.msra.mxu0 0.0
      %1438 = vmatprep.subr.mxu0 0.0
      %1439 = vmatpush2.xpose.msra.mxu0 0.0
      %1440 = vmatprep.subr.mxu0 0.0
      %1441 = vmatpush2.xpose.msra.mxu0 0.0
      %1442 = vmatprep.subr.mxu0 0.0
      %1443 = vmatpush2.xpose.msra.mxu0 0.0
      %1444 = vmatprep.subr.mxu0 0.0
      %1445 = vmatpush2.xpose.msra.mxu0 0.0
      %1446 = vmatprep.subr.mxu0 0.0
      %1447 = vmatpush2.xpose.msra.mxu0 0.0
      %1448 = vmatprep.subr.mxu0 0.0
      %1449 = vmatpush2.xpose.msra.mxu0 0.0
      %1450 = vmatprep.subr.mxu0 0.0
      %1451 = vmatpush2.xpose.msra.mxu0 0.0
      %1452 = vmatprep.subr.mxu0 0.0
      %1453 = vmatpush2.xpose.msra.mxu0 0.0
      %1454 = vmatprep.subr.mxu0 0.0
      %1455 = vmatpush2.xpose.msra.mxu0 0.0
      %1456 = vmatprep.subr.mxu0 0.0
      %1457 = vmatpush2.xpose.msra.mxu0 0.0
      %1458 = vmatprep.subr.mxu0 0.0
      %1459 = vmatpush2.xpose.msra.mxu0 0.0
      %1460 = vmatprep.subr.mxu0 0.0
      %1461 = vmatpush2.xpose.msra.mxu0 0.0
      %1462 = vmatprep.subr.mxu0 0.0
      %1463 = vmatpush2.xpose.msra.mxu0 0.0
      %1464 = vmatprep.subr.mxu0 0.0
      %1465 = vmatpush2.xpose.msra.mxu0 0.0
      %1466 = vmatprep.subr.mxu0 0.0
      %1467 = vmatpush2.xpose.msra.mxu0 0.0
      %1468 = vmatprep.mubr.f32.mxu0 0.0
      %1469 = vmatmul.mubr.f32.gmra.mxu0 %v1402
      %v1470 = vpop.f32.mrf.mxu0
      %v1471 = vadd.f32 0.0, %v1470
      %v1472 = vpop.f32.mrf.mxu0
      %1473 = vdwg.mxu0
      %v1474 = vsel %vm430, %v1174, 0.0
      %1475 = vadd.xlane.f32.xlu0 %v1474
      %v1476 = vpop.xlane.xlu0 %1475
      %v1477 = vsel %vm430, %v1175, 0.0
      %1478 = vadd.xlane.f32.xlu0 %v1477
      %v1479 = vpop.xlane.xlu0 %1478
      %v1480 = vmax.f32 %v1476, 1.0
      %v1481 = vrcp.pop %v1480
      %v1482 = vmul.f32 1.0, %v1481
      %v1483 = vmax.f32 %v1479, 1.0
      %v1484 = vrcp.pop %v1483
      %v1485 = vmul.f32 1.0, %v1484
      %vm1486 = vcmp.gt.f32.partialorder %v1476, 0.0
      %v1487 = vsel %vm1486, 1, 0
      %v1488 = vcvt.s32.f32 %v1487
      %v1489 = vmul.f32 %v1176, %v1488
      %vm1490 = vcmp.gt.f32.partialorder %v1479, 0.0
      %v1491 = vsel %vm1490, 1, 0
      %v1492 = vcvt.s32.f32 %v1491
      %v1493 = vmul.f32 %v1492, %v1063
      %vm1494 = vcmask 64512
      %v1496 = vsel %vm1494, %v1489, 0
      %1498 = vmatprep.subr.mxu0 0.0
      %1499 = vmatpush1.msra.mxu0 0.0
      %1500 = vmatprep.subr.mxu0 0.0
      %1501 = vmatpush1.msra.mxu0 0.0
      %1502 = vmatprep.subr.mxu0 0.0
      %1503 = vmatpush1.msra.mxu0 0.0
      %1504 = vmatprep.subr.mxu0 0.0
      %1505 = vmatpush1.msra.mxu0 0.0
      %1506 = vmatprep.subr.mxu0 0.0
      %1507 = vmatpush1.msra.mxu0 0.0
      %1508 = vmatprep.subr.mxu0 0.0
      %1509 = vmatpush1.msra.mxu0 0.0
      %1510 = vmatprep.subr.mxu0 0.0
      %1511 = vmatpush1.msra.mxu0 0.0
      %1512 = vmatprep.subr.mxu0 0.0
      %1513 = vmatpush1.msra.mxu0 0.0
      %1514 = vmatprep.subr.mxu0 0.0
      %1515 = vmatpush1.msra.mxu0 0.0
      %1516 = vmatprep.subr.mxu0 0.0
      %1517 = vmatpush1.msra.mxu0 0.0
      %1518 = vmatprep.subr.mxu0 0.0
      %1519 = vmatpush1.msra.mxu0 0.0
      %1520 = vmatprep.subr.mxu0 0.0
      %1521 = vmatpush1.msra.mxu0 0.0
      %1522 = vmatprep.subr.mxu0 0.0
      %1523 = vmatpush1.msra.mxu0 0.0
      %1524 = vmatprep.subr.mxu0 0.0
      %1525 = vmatpush1.msra.mxu0 0.0
      %1526 = vmatprep.subr.mxu0 0.0
      %1527 = vmatpush1.msra.mxu0 0.0
      %1528 = vmatprep.subr.mxu0 0.0
      %1529 = vmatpush1.msra.mxu0 %v1493
      %1530 = vmatprep.subr.mxu0 0.0
      %1531 = vmatpush2.msra.mxu0 0.0
      %1532 = vmatprep.subr.mxu0 0.0
      %1533 = vmatpush2.msra.mxu0 0.0
      %1534 = vmatprep.subr.mxu0 0.0
      %1535 = vmatpush2.msra.mxu0 0.0
      %1536 = vmatprep.subr.mxu0 0.0
      %1537 = vmatpush2.msra.mxu0 0.0
      %1538 = vmatprep.subr.mxu0 0.0
      %1539 = vmatpush2.msra.mxu0 0.0
      %1540 = vmatprep.subr.mxu0 0.0
      %1541 = vmatpush2.msra.mxu0 0.0
      %1542 = vmatprep.subr.mxu0 0.0
      %1543 = vmatpush2.msra.mxu0 0.0
      %1544 = vmatprep.subr.mxu0 0.0
      %1545 = vmatpush2.msra.mxu0 0.0
      %1546 = vmatprep.subr.mxu0 0.0
      %1547 = vmatpush2.msra.mxu0 0.0
      %1548 = vmatprep.subr.mxu0 0.0
      %1549 = vmatpush2.msra.mxu0 0.0
      %1550 = vmatprep.subr.mxu0 0.0
      %1551 = vmatpush2.msra.mxu0 0.0
      %1552 = vmatprep.subr.mxu0 0.0
      %1553 = vmatpush2.msra.mxu0 0.0
      %1554 = vmatprep.subr.mxu0 0.0
      %1555 = vmatpush2.msra.mxu0 0.0
      %1556 = vmatprep.subr.mxu0 0.0
      %1557 = vmatpush2.msra.mxu0 0.0
      %1558 = vmatprep.subr.mxu0 0.0
      %1559 = vmatpush2.msra.mxu0 0.0
      %1560 = vmatprep.subr.mxu0 0.0
      %1561 = vmatpush2.msra.mxu0 0.0
      %1562 = vmatprep.mubr.f32.mxu0 0.0
      %1563 = vmatmul.mubr.f32.gmra.mxu0 %v1496
      %v1564 = vpop.f32.mrf.mxu0
      %v1565 = vadd.f32 0.0, %v1564
      %v1566 = vpop.f32.mrf.mxu0
      %1567 = vdwg.mxu0
      %v1568 = vmul.f32 %v1253, %v1482
      %v1569 = vmul.f32 %v1568, %v1482
      %v1570 = vmul.f32 %v1330, %v1485
      %v1571 = vmul.f32 %v1570, %v1485
      %v1572 = vmul.f32 %v1565, %v1569
      %v1573 = vsel %vm1494, %v1572, 0.0
      %1574 = vadd.xlane.f32.xlu0 %v1573
      %v1575 = vpop.xlane.xlu0 %1574
      %v1576 = vrot.slane %v1575, 4
      %v1577 = vadd.f32 %v1575, %v1576
      %v1578 = vrot.slane %v1577, 2
      %v1579 = vadd.f32 %v1577, %v1578
      %v1580 = vrot.slane %v1579, 1
      %v1581 = vadd.f32 %v1579, %v1580
      %s1582 = vtos %v1581
      %v1583 = vmul.f32 %v1571, %v1063
      %v1585 = vsel %vm1494, %v1565, 0
      %1587 = vmatprep.subr.mxu0 0.0
      %1588 = vmatpush1.msra.mxu0 0.0
      %1589 = vmatprep.subr.mxu0 0.0
      %1590 = vmatpush1.msra.mxu0 0.0
      %1591 = vmatprep.subr.mxu0 0.0
      %1592 = vmatpush1.msra.mxu0 0.0
      %1593 = vmatprep.subr.mxu0 0.0
      %1594 = vmatpush1.msra.mxu0 0.0
      %1595 = vmatprep.subr.mxu0 0.0
      %1596 = vmatpush1.msra.mxu0 0.0
      %1597 = vmatprep.subr.mxu0 0.0
      %1598 = vmatpush1.msra.mxu0 0.0
      %1599 = vmatprep.subr.mxu0 0.0
      %1600 = vmatpush1.msra.mxu0 0.0
      %1601 = vmatprep.subr.mxu0 0.0
      %1602 = vmatpush1.msra.mxu0 0.0
      %1603 = vmatprep.subr.mxu0 0.0
      %1604 = vmatpush1.msra.mxu0 0.0
      %1605 = vmatprep.subr.mxu0 0.0
      %1606 = vmatpush1.msra.mxu0 0.0
      %1607 = vmatprep.subr.mxu0 0.0
      %1608 = vmatpush1.msra.mxu0 0.0
      %1609 = vmatprep.subr.mxu0 0.0
      %1610 = vmatpush1.msra.mxu0 0.0
      %1611 = vmatprep.subr.mxu0 0.0
      %1612 = vmatpush1.msra.mxu0 0.0
      %1613 = vmatprep.subr.mxu0 0.0
      %1614 = vmatpush1.msra.mxu0 0.0
      %1615 = vmatprep.subr.mxu0 0.0
      %1616 = vmatpush1.msra.mxu0 0.0
      %1617 = vmatprep.subr.mxu0 0.0
      %1618 = vmatpush1.msra.mxu0 %v1583
      %1619 = vmatprep.subr.mxu0 0.0
      %1620 = vmatpush2.msra.mxu0 0.0
      %1621 = vmatprep.subr.mxu0 0.0
      %1622 = vmatpush2.msra.mxu0 0.0
      %1623 = vmatprep.subr.mxu0 0.0
      %1624 = vmatpush2.msra.mxu0 0.0
      %1625 = vmatprep.subr.mxu0 0.0
      %1626 = vmatpush2.msra.mxu0 0.0
      %1627 = vmatprep.subr.mxu0 0.0
      %1628 = vmatpush2.msra.mxu0 0.0
      %1629 = vmatprep.subr.mxu0 0.0
      %1630 = vmatpush2.msra.mxu0 0.0
      %1631 = vmatprep.subr.mxu0 0.0
      %1632 = vmatpush2.msra.mxu0 0.0
      %1633 = vmatprep.subr.mxu0 0.0
      %1634 = vmatpush2.msra.mxu0 0.0
      %1635 = vmatprep.subr.mxu0 0.0
      %1636 = vmatpush2.msra.mxu0 0.0
      %1637 = vmatprep.subr.mxu0 0.0
      %1638 = vmatpush2.msra.mxu0 0.0
      %1639 = vmatprep.subr.mxu0 0.0
      %1640 = vmatpush2.msra.mxu0 0.0
      %1641 = vmatprep.subr.mxu0 0.0
      %1642 = vmatpush2.msra.mxu0 0.0
      %1643 = vmatprep.subr.mxu0 0.0
      %1644 = vmatpush2.msra.mxu0 0.0
      %1645 = vmatprep.subr.mxu0 0.0
      %1646 = vmatpush2.msra.mxu0 0.0
      %1647 = vmatprep.subr.mxu0 0.0
      %1648 = vmatpush2.msra.mxu0 0.0
      %1649 = vmatprep.subr.mxu0 0.0
      %1650 = vmatpush2.msra.mxu0 0.0
      %1651 = vmatprep.mubr.f32.mxu0 0.0
      %1652 = vmatmul.mubr.f32.gmra.mxu0 %v1585
      %v1653 = vpop.f32.mrf.mxu0
      %v1654 = vadd.f32 0.0, %v1653
      %v1655 = vpop.f32.mrf.mxu0
      %1656 = vdwg.mxu0
      %v1657 = vsel %vm1494, %v1654, 0.0
      %1658 = vadd.xlane.f32.xlu0 %v1657
      %v1659 = vpop.xlane.xlu0 %1658
      %v1660 = vrot.slane %v1659, 4
      %v1661 = vadd.f32 %v1659, %v1660
      %v1662 = vrot.slane %v1661, 2
      %v1663 = vadd.f32 %v1661, %v1662
      %v1664 = vrot.slane %v1663, 1
      %v1665 = vadd.f32 %v1663, %v1664
      %s1666 = vtos %v1665
      %v1667 = vmul.f32 %v1565, %v1471
      %v1668 = vmul.f32 %v1667, %v1482
      %v1669 = vmul.f32 %v1485, %v1063
      %v1671 = vsel %vm1494, %v1668, 0
      %1673 = vmatprep.subr.mxu0 0.0
      %1674 = vmatpush1.msra.mxu0 0.0
      %1675 = vmatprep.subr.mxu0 0.0
      %1676 = vmatpush1.msra.mxu0 0.0
      %1677 = vmatprep.subr.mxu0 0.0
      %1678 = vmatpush1.msra.mxu0 0.0
      %1679 = vmatprep.subr.mxu0 0.0
      %1680 = vmatpush1.msra.mxu0 0.0
      %1681 = vmatprep.subr.mxu0 0.0
      %1682 = vmatpush1.msra.mxu0 0.0
      %1683 = vmatprep.subr.mxu0 0.0
      %1684 = vmatpush1.msra.mxu0 0.0
      %1685 = vmatprep.subr.mxu0 0.0
      %1686 = vmatpush1.msra.mxu0 0.0
      %1687 = vmatprep.subr.mxu0 0.0
      %1688 = vmatpush1.msra.mxu0 0.0
      %1689 = vmatprep.subr.mxu0 0.0
      %1690 = vmatpush1.msra.mxu0 0.0
      %1691 = vmatprep.subr.mxu0 0.0
      %1692 = vmatpush1.msra.mxu0 0.0
      %1693 = vmatprep.subr.mxu0 0.0
      %1694 = vmatpush1.msra.mxu0 0.0
      %1695 = vmatprep.subr.mxu0 0.0
      %1696 = vmatpush1.msra.mxu0 0.0
      %1697 = vmatprep.subr.mxu0 0.0
      %1698 = vmatpush1.msra.mxu0 0.0
      %1699 = vmatprep.subr.mxu0 0.0
      %1700 = vmatpush1.msra.mxu0 0.0
      %1701 = vmatprep.subr.mxu0 0.0
      %1702 = vmatpush1.msra.mxu0 0.0
      %1703 = vmatprep.subr.mxu0 0.0
      %1704 = vmatpush1.msra.mxu0 %v1669
      %1705 = vmatprep.subr.mxu0 0.0
      %1706 = vmatpush2.msra.mxu0 0.0
      %1707 = vmatprep.subr.mxu0 0.0
      %1708 = vmatpush2.msra.mxu0 0.0
      %1709 = vmatprep.subr.mxu0 0.0
      %1710 = vmatpush2.msra.mxu0 0.0
      %1711 = vmatprep.subr.mxu0 0.0
      %1712 = vmatpush2.msra.mxu0 0.0
      %1713 = vmatprep.subr.mxu0 0.0
      %1714 = vmatpush2.msra.mxu0 0.0
      %1715 = vmatprep.subr.mxu0 0.0
      %1716 = vmatpush2.msra.mxu0 0.0
      %1717 = vmatprep.subr.mxu0 0.0
      %1718 = vmatpush2.msra.mxu0 0.0
      %1719 = vmatprep.subr.mxu0 0.0
      %1720 = vmatpush2.msra.mxu0 0.0
      %1721 = vmatprep.subr.mxu0 0.0
      %1722 = vmatpush2.msra.mxu0 0.0
      %1723 = vmatprep.subr.mxu0 0.0
      %1724 = vmatpush2.msra.mxu0 0.0
      %1725 = vmatprep.subr.mxu0 0.0
      %1726 = vmatpush2.msra.mxu0 0.0
      %1727 = vmatprep.subr.mxu0 0.0
      %1728 = vmatpush2.msra.mxu0 0.0
      %1729 = vmatprep.subr.mxu0 0.0
      %1730 = vmatpush2.msra.mxu0 0.0
      %1731 = vmatprep.subr.mxu0 0.0
      %1732 = vmatpush2.msra.mxu0 0.0
      %1733 = vmatprep.subr.mxu0 0.0
      %1734 = vmatpush2.msra.mxu0 0.0
      %1735 = vmatprep.subr.mxu0 0.0
      %1736 = vmatpush2.msra.mxu0 0.0
      %1737 = vmatprep.mubr.f32.mxu0 0.0
      %1738 = vmatmul.mubr.f32.gmra.mxu0 %v1671
      %v1739 = vpop.f32.mrf.mxu0
      %v1740 = vadd.f32 0.0, %v1739
      %v1741 = vpop.f32.mrf.mxu0
      %1742 = vdwg.mxu0
      %v1743 = vsel %vm1494, %v1740, 0.0
      %1744 = vadd.xlane.f32.xlu0 %v1743
      %v1745 = vpop.xlane.xlu0 %1744
      %v1746 = vrot.slane %v1745, 4
      %v1747 = vadd.f32 %v1745, %v1746
      %v1748 = vrot.slane %v1747, 2
      %v1749 = vadd.f32 %v1747, %v1748
      %v1750 = vrot.slane %v1749, 1
      %v1751 = vadd.f32 %v1749, %v1750
      %s1752 = vtos %v1751
      %s1753 = sadd.f32 %s1582, %s1666
      %s1754 = smul.f32 %s1752, 2.0
      %s1755 = ssub.f32 %s1753, %s1754
      %s1756 = smul.f32 %s1755, 0.5
      %s1757 = scalar_lea.smem [#allocation14], 0
      %1758 = sst [smem:[%s1757]] %s1756
    $region49: #{tpu_custom_call.1} parent=1 // pred_fallthru
      _
    // Predicated region
    $region50: #{tpu_custom_call.1} parent=1 // pred_check
      _
    $region51: #{tpu_custom_call.1} parent=1 // pred_check_branch
      %1760 = sbr.rel (0) target = $region53
    $region52: #{tpu_custom_call.1} parent=1 // pred_region
      %s1762 = ssub.s32 16, 16
      %1763 = vsyncadd [#allocation7], %s1762
      %1766 = dma.smem_to_hbm [#allocation14], 16, %s5, [#allocation7]
    $region53: #{tpu_custom_call.1} parent=1 // pred_fallthru
      _
    // Predicated region
    $region54: #{tpu_custom_call.1} parent=1 // pred_check
      _
    $region55: #{tpu_custom_call.1} parent=1 // pred_check_branch
      %1768 = sbr.rel (0) target = $region57
    $region56: #{tpu_custom_call.1} parent=1 // pred_region
      %1769 = dma.done [#allocation7], 16
    $region57: #{tpu_custom_call.1} parent=1 // pred_fallthru
      _
    %1770 = sfence
    %1771 = vsyncpa [#allocation6], 1
    %1772 = vsyncpa [#allocation9], 1
    %1773 = vsyncpa [#allocation12], 1
    %1774 = vsyncpa [#allocation7], 1

</llo_original>
